<compile_context>
chip_gen: v7x
topology: tpu7x:2x2x1
jax: 0.10.0
libtpu: 0.0.40
codegen_flags: <defaults>
</compile_context>

<pallas_src>
import functools

import jax
import jax.numpy as jnp
from jax.experimental import pallas as pl
from jax.experimental.pallas import tpu as pltpu

LRELU_SLOPE = 0.1

# Static per-layer (stride, pad) for kernel_size=5 convs; conv_post is (3,1,1).
CONV_SPECS = ((3, 2), (3, 2), (3, 2), (3, 2), (1, 2))   # (stride, pad), K=5
POST_SPEC = (1, 1)                                      # (stride, pad), K=3
KERNEL_SIZE = 5
POST_KERNEL_SIZE = 3

VMEM_LIMIT_BYTES = 32 * 1024 * 1024   # explicit so v5e (16 MiB default) keeps big tiles


def _round_up(x, m):
    return (x + m - 1) // m * m


def _choose_tile(total, cap, unit):
    """Largest multiple of `unit` that divides `total`, capped at `cap`."""
    cap = min(cap, total)
    best = min(unit, total)
    t = unit
    while t <= cap:
        if total % t == 0:
            best = t
        t += unit
    return best


def _pad_dims(ck, cout):
    """Padded (CKp, Np) for a layer with contraction CK=Cin*K and Cout channels."""
    ckp = _round_up(ck, 16) if ck < 128 else _round_up(ck, 128)
    np_ = _round_up(cout, 16)
    return ckp, np_


# ---------------------------------------------------------------------------
# Pallas kernels: out = act(W @ patches^T + b), f32 accumulation on the MXU.
# ---------------------------------------------------------------------------
def _mm_bias_act_kernel(w_ref, x_ref, b_ref, o_ref, *, apply_lrelu):
    # Single contraction step: write o_ref directly (no VMEM scratch needed).
    acc = jnp.dot(w_ref[...], x_ref[...], preferred_element_type=jnp.float32)
    acc = acc + b_ref[...]
    if apply_lrelu:
        acc = jnp.where(acc >= 0.0, acc, LRELU_SLOPE * acc)
    o_ref[...] = acc.astype(o_ref.dtype)


def _mm_bias_act_kernel_acc(w_ref, x_ref, b_ref, o_ref, acc_ref, *, apply_lrelu):
    @pl.when(pl.program_id(2) == 0)
    def _():
        acc_ref[...] = jnp.zeros_like(acc_ref)

    acc_ref[...] += jnp.dot(w_ref[...], x_ref[...],
                            preferred_element_type=jnp.float32)

    @pl.when(pl.program_id(2) == pl.num_programs(2) - 1)
    def _():
        acc = acc_ref[...] + b_ref[...]
        if apply_lrelu:
            acc = jnp.where(acc >= 0.0, acc, LRELU_SLOPE * acc)
        o_ref[...] = acc.astype(o_ref.dtype)


def _pallas_matmul_bias_act(patches_t, w_pad, b_pad, *, cout, apply_lrelu, out_dtype):
    """leaky_relu(W @ patches^T + b)[:cout, :M].

    patches_t : (CK, M)   bf16  -- contraction on sublanes, M (lane-dense) on lanes
    w_pad     : (Np, CKp) bf16  -- pre-transposed / pre-padded weights
    b_pad     : (Np, 1)   f32
    returns   : (cout, M) out_dtype
    """
    CK, M = patches_t.shape
    Np, CKp = w_pad.shape
    assert (CKp, Np) == _pad_dims(CK, cout), "prepared weights do not match layer dims"

    Mp = _round_up(M, 128)
    tm = _choose_tile(Mp, 1024, 128)
    if Mp // tm == 1 and Mp >= 256:
        # v7x megacore: ensure the (parallel) M axis has >= 2 tiles even when the
        # Cout axis is a single tile, so both TensorCores get work.
        tm = _choose_tile(Mp, Mp // 2, 128)
    tn = _choose_tile(Np, 512, 16)
    tk = CKp if CKp < 128 else _choose_tile(CKp, 1024, 128)

    xp = patches_t
    if (CKp, Mp) != (CK, M):
        xp = jnp.pad(patches_t, ((0, CKp - CK), (0, Mp - M)))

    grid = (Np // tn, Mp // tm, CKp // tk)
    nk = grid[2]

    in_specs = [
        pl.BlockSpec((tn, tk), lambda i, j, k: (i, k)),   # weights W^T tile
        pl.BlockSpec((tk, tm), lambda i, j, k: (k, j)),   # patches^T tile
        pl.BlockSpec((tn, 1), lambda i, j, k: (i, 0)),    # bias column
    ]
    out_spec = pl.BlockSpec((tn, tm), lambda i, j, k: (i, j))

    cost = pl.CostEstimate(
        flops=2 * Np * Mp * CKp,
        transcendentals=0,
        bytes_accessed=(Np * CKp * 2 + CKp * Mp * 2
                        + Np * Mp * jnp.dtype(out_dtype).itemsize + Np * 4))
    cparams = pltpu.CompilerParams(
        dimension_semantics=("parallel", "parallel", "arbitrary"),
        vmem_limit_bytes=VMEM_LIMIT_BYTES)

    if nk == 1:
        kernel = functools.partial(_mm_bias_act_kernel, apply_lrelu=apply_lrelu)
        scratch = []
    else:
        kernel = functools.partial(_mm_bias_act_kernel_acc, apply_lrelu=apply_lrelu)
        scratch = [pltpu.VMEM((tn, tm), jnp.float32)]

    out = pl.pallas_call(
        kernel,
        out_shape=jax.ShapeDtypeStruct((Np, Mp), out_dtype),
        grid=grid,
        in_specs=in_specs,
        out_specs=out_spec,
        scratch_shapes=scratch,
        compiler_params=cparams,
        cost_estimate=cost,
    )(w_pad, xp, b_pad)
    return out[:cout, :M]


# ---------------------------------------------------------------------------
# Conv2d with kernel (K, 1), stride (S, 1), padding (P, 0) in channel-leading
# layout.  x: (Cin, B, H, W) bf16  ->  out: (Cout, B, H_out, W) out_dtype.
# im2col keeps (cin, k) on sublanes and (b, h_out, w) on lanes: no transposes.
# ---------------------------------------------------------------------------
def conv_period(x, w_pad, b_pad, *, cout, k, stride, pad, apply_lrelu, out_dtype):
    Cin, B, H, W = x.shape
    xp = jnp.pad(x, ((0, 0), (0, 0), (pad, pad), (0, 0)))
    Hp = H + 2 * pad
    Ho = (Hp - k) // stride + 1

    cols = [
        xp[:, :, t: t + stride * (Ho - 1) + 1: stride, :]   # (Cin, B, Ho, W)
        for t in range(k)
    ]
    patches_t = jnp.stack(cols, axis=1)                      # (Cin, K, B, Ho, W)
    patches_t = patches_t.reshape(Cin * k, B * Ho * W)       # (Cin*K, M) bf16

    out = _pallas_matmul_bias_act(patches_t, w_pad, b_pad, cout=cout,
                                  apply_lrelu=apply_lrelu, out_dtype=out_dtype)
    return out.reshape(cout, B, Ho, W)


# ---------------------------------------------------------------------------
# Parameter construction (deterministic, weight_norm parameterization) and
# one-time weight preparation (transpose / pad / bf16) hoisted out of forward.
# ---------------------------------------------------------------------------
def _channels(d_mult):
    return [1, int(32 * d_mult), int(128 * d_mult),
            int(512 * d_mult), int(1024 * d_mult), int(1024 * d_mult)]


def _layer_metas(d_mult):
    chs = _channels(d_mult)
    metas = []
    for i in range(5):
        s, p = CONV_SPECS[i]
        metas.append((chs[i], chs[i + 1], KERNEL_SIZE, s, p))
    metas.append((chs[5], 1, POST_KERNEL_SIZE, POST_SPEC[0], POST_SPEC[1]))
    return tuple(metas)


def _init_conv_params(key, cout, cin, k):
    kv, kg, kb = jax.random.split(key, 3)
    v = 0.05 * jax.random.normal(kv, (cout, cin, k, 1), jnp.float32)
    g = 1.0 + 0.1 * jax.random.normal(kg, (cout,), jnp.float32)
    b = 0.01 * jax.random.normal(kb, (cout,), jnp.float32)
    # weight_norm(dim=0): w = g * v / ||v|| (norm over in-ch, kh, kw per out-ch)
    norm = jnp.sqrt(jnp.sum(v * v, axis=(1, 2, 3), keepdims=True))
    w = (g.reshape(-1, 1, 1, 1) / norm) * v
    return w, b


def make_discriminator_p_params(key, d_mult):
    chs = _channels(d_mult)
    keys = jax.random.split(key, 6)
    convs = []
    for i in range(5):
        w, b = _init_conv_params(keys[i], chs[i + 1], chs[i], KERNEL_SIZE)
        convs.append((w, b))
    w_post, b_post = _init_conv_params(keys[5], 1, chs[5], POST_KERNEL_SIZE)
    return {"convs": convs, "conv_post": (w_post, b_post)}


def prepare_discriminator_params(raw):
    """One-time prep: (Cout,Cin,K,1) f32 -> padded (Np, CKp) bf16 W^T + (Np,1) f32 bias."""
    layers = list(raw["convs"]) + [raw["conv_post"]]
    prepped = []
    for (w, b) in layers:
        cout, cin, k = int(w.shape[0]), int(w.shape[1]), int(w.shape[2])
        ck = cin * k
        ckp, np_ = _pad_dims(ck, cout)
        w2t = w[..., 0].reshape(cout, ck)                 # (Cout, Cin*K), (cin,k)-major
        w2t = jnp.pad(w2t, ((0, np_ - cout), (0, ckp - ck))).astype(jnp.bfloat16)
        b2 = jnp.pad(b.astype(jnp.float32), (0, np_ - cout)).reshape(np_, 1)
        prepped.append((w2t, b2))
    return prepped


# ---------------------------------------------------------------------------
# DiscriminatorP / MultiPeriodDiscriminator forward.
# ---------------------------------------------------------------------------
def discriminator_p_forward(x, prepped, metas, period):
    # x: (B, 1, T) f32
    B, C, T = x.shape
    if T % period != 0:
        n_pad = period - T % period
        x = jnp.pad(x, ((0, 0), (0, 0), (0, n_pad)), mode="reflect")
        T = T + n_pad
    # Internal channel-leading layout (C, B, H, W); C == 1 so this is cheap.
    x = x.reshape(B, C, T // period, period).transpose(1, 0, 2, 3)
    x = x.astype(jnp.bfloat16)

    fmap = []
    n_layers = len(prepped)
    for i, ((w_pad, b_pad), (cin, cout, k, stride, pad)) in enumerate(zip(prepped, metas)):
        last = (i == n_layers - 1)                      # conv_post: no lrelu, f32 out
        x = conv_period(x, w_pad, b_pad, cout=cout, k=k, stride=stride, pad=pad,
                        apply_lrelu=not last,
                        out_dtype=jnp.float32 if last else jnp.bfloat16)
        # Externally-visible fmaps in PyTorch NCHW layout, f32.
        fmap.append(jnp.transpose(x, (1, 0, 2, 3)).astype(jnp.float32))

    logits = fmap[-1].reshape(B, -1)                    # torch.flatten(x, 1, -1)
    return logits, fmap


def make_mpd_forward(periods, d_mult):
    periods = tuple(int(p) for p in periods)
    metas = _layer_metas(d_mult)

    @jax.jit
    def fwd(y, y_hat, prepped_all):
        B = y.shape[0]
        # Batch real + generated so each discriminator runs a single forward.
        x = jnp.concatenate([y, y_hat], axis=0)        # (2B, 1, T)
        y_d_rs, y_d_gs, fmap_rs, fmap_gs = [], [], [], []
        for prepped, period in zip(prepped_all, periods):
            logits, fmaps = discriminator_p_forward(x, prepped, metas, period)
            y_d_rs.append(logits[:B])
            y_d_gs.append(logits[B:])
            fmap_rs.append([f[:B] for f in fmaps])
            fmap_gs.append([f[B:] for f in fmaps])
        return y_d_rs, y_d_gs, fmap_rs, fmap_gs

    return fwd


# ---------------------------------------------------------------------------
if __name__ == "__main__":
    # Small synthetic config (mirrors h.mpd_reshapes / h.discriminator_channel_mult)
    mpd_reshapes = [2, 3, 7]          # period 7 exercises the reflect-pad branch
    d_mult = 0.125                    # channels: 4, 16, 64, 128, 128
    B, C, T = 2, 1, 60

    key = jax.random.PRNGKey(0)
    k_y, k_yh, k_params = jax.random.split(key, 3)
    y = jax.random.normal(k_y, (B, C, T), jnp.float32)
    y_hat = jax.random.normal(k_yh, (B, C, T), jnp.float32)

    param_keys = jax.random.split(k_params, len(mpd_reshapes))
    raw_params = [make_discriminator_p_params(pk, d_mult) for pk in param_keys]
    # Hoisted out of the per-step forward: transpose / pad / bf16-cast once.
    prepped_all = [prepare_discriminator_params(p) for p in raw_params]

    mpd_forward = make_mpd_forward(mpd_reshapes, d_mult)
    outs = mpd_forward(y, y_hat, prepped_all)
    outs = jax.block_until_ready(outs)

    # Basic sanity: one logit vector + 6 fmaps per discriminator per input.
    y_d_rs, y_d_gs, fmap_rs, fmap_gs = outs
    assert len(y_d_rs) == len(mpd_reshapes) and len(fmap_rs) == len(mpd_reshapes)
    assert all(len(f) == 6 for f in fmap_rs) and all(len(f) == 6 for f in fmap_gs)
    assert all(r.shape == g.shape for r, g in zip(y_d_rs, y_d_gs))
    assert all(f.shape[0] == B for fs in fmap_rs for f in fs)
    assert all(f.dtype == jnp.float32 for fs in fmap_rs for f in fs)

    print("KERNEL_OK")
</pallas_src>

<mosaic_0001>
module attributes {stable_mosaic.version = 11 : i64} {
  func.func @_mm_bias_act_kernel(%arg0: i32, %arg1: i32, %arg2: i32, %arg3: memref<16x16xbf16, #tpu.memory_space<vmem>>, %arg4: memref<16x128xbf16, #tpu.memory_space<vmem>>, %arg5: memref<16x1xf32, #tpu.memory_space<vmem>>, %arg6: memref<16x128xbf16, #tpu.memory_space<vmem>>) attributes {dimension_semantics = [#tpu.dimension_semantics<parallel>, #tpu.dimension_semantics<parallel>, #tpu.dimension_semantics<arbitrary>], iteration_bounds = array<i64: 1, 1, 1>, scalar_prefetch = 0 : i64, scratch_operands = 0 : i64, tpu.core_type = #tpu.core_type<tc>, window_params = [{transform_indices = @transform_0, window_bounds = array<i64: 16, 16>}, {transform_indices = @transform_1, window_bounds = array<i64: 16, 128>}, {transform_indices = @transform_2, window_bounds = array<i64: 16, 1>}, {transform_indices = @transform_3, window_bounds = array<i64: 16, 128>}]} {
    %c0 = arith.constant 0 : index
    %c0_0 = arith.constant 0 : index
    %0 = vector.load %arg3[%c0, %c0_0] : memref<16x16xbf16, #tpu.memory_space<vmem>>, vector<16x16xbf16>
    %c0_1 = arith.constant 0 : index
    %c0_2 = arith.constant 0 : index
    %1 = vector.load %arg4[%c0_1, %c0_2] : memref<16x128xbf16, #tpu.memory_space<vmem>>, vector<16x128xbf16>
    %cst = arith.constant dense<0.000000e+00> : vector<16x128xf32>
    %2 = tpu.matmul %0, %1, %cst {dimension_numbers = #tpu.dot_dimension_numbers<[1], [0], [0], [1], [0, 0, 1, 1], [], []>} : vector<16x16xbf16>, vector<16x128xbf16>, vector<16x128xf32> -> vector<16x128xf32>
    %c0_3 = arith.constant 0 : index
    %c0_4 = arith.constant 0 : index
    %3 = vector.load %arg5[%c0_3, %c0_4] : memref<16x1xf32, #tpu.memory_space<vmem>>, vector<16x1xf32>
    %4 = vector.broadcast %3 : vector<16x1xf32> to vector<16x128xf32>
    %5 = arith.addf %2, %4 : vector<16x128xf32>
    %cst_5 = arith.constant 0.000000e+00 : f32
    %6 = vector.broadcast %cst_5 : f32 to vector<16x128xf32>
    %7 = arith.cmpf oge, %5, %6 : vector<16x128xf32>
    %cst_6 = arith.constant 1.000000e-01 : f32
    %8 = vector.broadcast %cst_6 : f32 to vector<16x128xf32>
    %9 = arith.mulf %8, %5 : vector<16x128xf32>
    %10 = arith.select %7, %5, %9 : vector<16x128xi1>, vector<16x128xf32>
    %11 = arith.truncf %10 : vector<16x128xf32> to vector<16x128xbf16>
    %c0_7 = arith.constant 0 : index
    %c0_8 = arith.constant 0 : index
    %12 = vector.load %arg6[%c0_7, %c0_8] : memref<16x128xbf16, #tpu.memory_space<vmem>>, vector<16x128xbf16>
    tpu.vector_store %arg6[%c0_7, %c0_8], %11 {strides = array<i32>} : memref<16x128xbf16, #tpu.memory_space<vmem>>, vector<16x128xbf16>,
    return
  }
  func.func @transform_0(%arg0: i32, %arg1: i32, %arg2: i32) -> (i32, i32) {
    %c0_i32 = arith.constant 0 : i32
    return %arg0, %arg2 : i32, i32
  }
  func.func @transform_1(%arg0: i32, %arg1: i32, %arg2: i32) -> (i32, i32) {
    %c0_i32 = arith.constant 0 : i32
    return %arg2, %arg1 : i32, i32
  }
  func.func @transform_2(%arg0: i32, %arg1: i32, %arg2: i32) -> (i32, i32) {
    %c0_i32 = arith.constant 0 : i32
    %c0_i32_0 = arith.constant 0 : i32
    return %arg0, %c0_i32 : i32, i32
  }
  func.func @transform_3(%arg0: i32, %arg1: i32, %arg2: i32) -> (i32, i32) {
    %c0_i32 = arith.constant 0 : i32
    return %arg0, %arg1 : i32, i32
  }
}

module attributes {stable_mosaic.version = 11 : i64} {
  func.func @_mm_bias_act_kernel(%arg0: i32, %arg1: i32, %arg2: i32, %arg3: memref<16x32xbf16, #tpu.memory_space<vmem>>, %arg4: memref<32x128xbf16, #tpu.memory_space<vmem>>, %arg5: memref<16x1xf32, #tpu.memory_space<vmem>>, %arg6: memref<16x128xbf16, #tpu.memory_space<vmem>>) attributes {dimension_semantics = [#tpu.dimension_semantics<parallel>, #tpu.dimension_semantics<parallel>, #tpu.dimension_semantics<arbitrary>], iteration_bounds = array<i64: 1, 1, 1>, scalar_prefetch = 0 : i64, scratch_operands = 0 : i64, tpu.core_type = #tpu.core_type<tc>, window_params = [{transform_indices = @transform_0, window_bounds = array<i64: 16, 32>}, {transform_indices = @transform_1, window_bounds = array<i64: 32, 128>}, {transform_indices = @transform_2, window_bounds = array<i64: 16, 1>}, {transform_indices = @transform_3, window_bounds = array<i64: 16, 128>}]} {
    %c0 = arith.constant 0 : index
    %c0_0 = arith.constant 0 : index
    %0 = vector.load %arg3[%c0, %c0_0] : memref<16x32xbf16, #tpu.memory_space<vmem>>, vector<16x32xbf16>
    %c0_1 = arith.constant 0 : index
    %c0_2 = arith.constant 0 : index
    %1 = vector.load %arg4[%c0_1, %c0_2] : memref<32x128xbf16, #tpu.memory_space<vmem>>, vector<32x128xbf16>
    %cst = arith.constant dense<0.000000e+00> : vector<16x128xf32>
    %2 = tpu.matmul %0, %1, %cst {dimension_numbers = #tpu.dot_dimension_numbers<[1], [0], [0], [1], [0, 0, 1, 1], [], []>} : vector<16x32xbf16>, vector<32x128xbf16>, vector<16x128xf32> -> vector<16x128xf32>
    %c0_3 = arith.constant 0 : index
    %c0_4 = arith.constant 0 : index
    %3 = vector.load %arg5[%c0_3, %c0_4] : memref<16x1xf32, #tpu.memory_space<vmem>>, vector<16x1xf32>
    %4 = vector.broadcast %3 : vector<16x1xf32> to vector<16x128xf32>
    %5 = arith.addf %2, %4 : vector<16x128xf32>
    %cst_5 = arith.constant 0.000000e+00 : f32
    %6 = vector.broadcast %cst_5 : f32 to vector<16x128xf32>
    %7 = arith.cmpf oge, %5, %6 : vector<16x128xf32>
    %cst_6 = arith.constant 1.000000e-01 : f32
    %8 = vector.broadcast %cst_6 : f32 to vector<16x128xf32>
    %9 = arith.mulf %8, %5 : vector<16x128xf32>
    %10 = arith.select %7, %5, %9 : vector<16x128xi1>, vector<16x128xf32>
    %11 = arith.truncf %10 : vector<16x128xf32> to vector<16x128xbf16>
    %c0_7 = arith.constant 0 : index
    %c0_8 = arith.constant 0 : index
    %12 = vector.load %arg6[%c0_7, %c0_8] : memref<16x128xbf16, #tpu.memory_space<vmem>>, vector<16x128xbf16>
    tpu.vector_store %arg6[%c0_7, %c0_8], %11 {strides = array<i32>} : memref<16x128xbf16, #tpu.memory_space<vmem>>, vector<16x128xbf16>,
    return
  }
  func.func @transform_0(%arg0: i32, %arg1: i32, %arg2: i32) -> (i32, i32) {
    %c0_i32 = arith.constant 0 : i32
    return %arg0, %arg2 : i32, i32
  }
  func.func @transform_1(%arg0: i32, %arg1: i32, %arg2: i32) -> (i32, i32) {
    %c0_i32 = arith.constant 0 : i32
    return %arg2, %arg1 : i32, i32
  }
  func.func @transform_2(%arg0: i32, %arg1: i32, %arg2: i32) -> (i32, i32) {
    %c0_i32 = arith.constant 0 : i32
    %c0_i32_0 = arith.constant 0 : i32
    return %arg0, %c0_i32 : i32, i32
  }
  func.func @transform_3(%arg0: i32, %arg1: i32, %arg2: i32) -> (i32, i32) {
    %c0_i32 = arith.constant 0 : i32
    return %arg0, %arg1 : i32, i32
  }
}

module attributes {stable_mosaic.version = 11 : i64} {
  func.func @_mm_bias_act_kernel(%arg0: i32, %arg1: i32, %arg2: i32, %arg3: memref<64x80xbf16, #tpu.memory_space<vmem>>, %arg4: memref<80x128xbf16, #tpu.memory_space<vmem>>, %arg5: memref<64x1xf32, #tpu.memory_space<vmem>>, %arg6: memref<64x128xbf16, #tpu.memory_space<vmem>>) attributes {dimension_semantics = [#tpu.dimension_semantics<parallel>, #tpu.dimension_semantics<parallel>, #tpu.dimension_semantics<arbitrary>], iteration_bounds = array<i64: 1, 1, 1>, scalar_prefetch = 0 : i64, scratch_operands = 0 : i64, tpu.core_type = #tpu.core_type<tc>, window_params = [{transform_indices = @transform_0, window_bounds = array<i64: 64, 80>}, {transform_indices = @transform_1, window_bounds = array<i64: 80, 128>}, {transform_indices = @transform_2, window_bounds = array<i64: 64, 1>}, {transform_indices = @transform_3, window_bounds = array<i64: 64, 128>}]} {
    %c0 = arith.constant 0 : index
    %c0_0 = arith.constant 0 : index
    %0 = vector.load %arg3[%c0, %c0_0] : memref<64x80xbf16, #tpu.memory_space<vmem>>, vector<64x80xbf16>
    %c0_1 = arith.constant 0 : index
    %c0_2 = arith.constant 0 : index
    %1 = vector.load %arg4[%c0_1, %c0_2] : memref<80x128xbf16, #tpu.memory_space<vmem>>, vector<80x128xbf16>
    %cst = arith.constant dense<0.000000e+00> : vector<64x128xf32>
    %2 = tpu.matmul %0, %1, %cst {dimension_numbers = #tpu.dot_dimension_numbers<[1], [0], [0], [1], [0, 0, 1, 1], [], []>} : vector<64x80xbf16>, vector<80x128xbf16>, vector<64x128xf32> -> vector<64x128xf32>
    %c0_3 = arith.constant 0 : index
    %c0_4 = arith.constant 0 : index
    %3 = vector.load %arg5[%c0_3, %c0_4] : memref<64x1xf32, #tpu.memory_space<vmem>>, vector<64x1xf32>
    %4 = vector.broadcast %3 : vector<64x1xf32> to vector<64x128xf32>
    %5 = arith.addf %2, %4 : vector<64x128xf32>
    %cst_5 = arith.constant 0.000000e+00 : f32
    %6 = vector.broadcast %cst_5 : f32 to vector<64x128xf32>
    %7 = arith.cmpf oge, %5, %6 : vector<64x128xf32>
    %cst_6 = arith.constant 1.000000e-01 : f32
    %8 = vector.broadcast %cst_6 : f32 to vector<64x128xf32>
    %9 = arith.mulf %8, %5 : vector<64x128xf32>
    %10 = arith.select %7, %5, %9 : vector<64x128xi1>, vector<64x128xf32>
    %11 = arith.truncf %10 : vector<64x128xf32> to vector<64x128xbf16>
    %c0_7 = arith.constant 0 : index
    %c0_8 = arith.constant 0 : index
    %12 = vector.load %arg6[%c0_7, %c0_8] : memref<64x128xbf16, #tpu.memory_space<vmem>>, vector<64x128xbf16>
    tpu.vector_store %arg6[%c0_7, %c0_8], %11 {strides = array<i32>} : memref<64x128xbf16, #tpu.memory_space<vmem>>, vector<64x128xbf16>,
    return
  }
  func.func @transform_0(%arg0: i32, %arg1: i32, %arg2: i32) -> (i32, i32) {
    %c0_i32 = arith.constant 0 : i32
    return %arg0, %arg2 : i32, i32
  }
  func.func @transform_1(%arg0: i32, %arg1: i32, %arg2: i32) -> (i32, i32) {
    %c0_i32 = arith.constant 0 : i32
    return %arg2, %arg1 : i32, i32
  }
  func.func @transform_2(%arg0: i32, %arg1: i32, %arg2: i32) -> (i32, i32) {
    %c0_i32 = arith.constant 0 : i32
    %c0_i32_0 = arith.constant 0 : i32
    return %arg0, %c0_i32 : i32, i32
  }
  func.func @transform_3(%arg0: i32, %arg1: i32, %arg2: i32) -> (i32, i32) {
    %c0_i32 = arith.constant 0 : i32
    return %arg0, %arg1 : i32, i32
  }
}

module attributes {stable_mosaic.version = 11 : i64} {
  func.func @_mm_bias_act_kernel(%arg0: i32, %arg1: i32, %arg2: i32, %arg3: memref<128x384xbf16, #tpu.memory_space<vmem>>, %arg4: memref<384x128xbf16, #tpu.memory_space<vmem>>, %arg5: memref<128x1xf32, #tpu.memory_space<vmem>>, %arg6: memref<128x128xbf16, #tpu.memory_space<vmem>>) attributes {dimension_semantics = [#tpu.dimension_semantics<parallel>, #tpu.dimension_semantics<parallel>, #tpu.dimension_semantics<arbitrary>], iteration_bounds = array<i64: 1, 1, 1>, scalar_prefetch = 0 : i64, scratch_operands = 0 : i64, tpu.core_type = #tpu.core_type<tc>, window_params = [{transform_indices = @transform_0, window_bounds = array<i64: 128, 384>}, {transform_indices = @transform_1, window_bounds = array<i64: 384, 128>}, {transform_indices = @transform_2, window_bounds = array<i64: 128, 1>}, {transform_indices = @transform_3, window_bounds = array<i64: 128, 128>}]} {
    %c0 = arith.constant 0 : index
    %c0_0 = arith.constant 0 : index
    %0 = vector.load %arg3[%c0, %c0_0] : memref<128x384xbf16, #tpu.memory_space<vmem>>, vector<128x384xbf16>
    %c0_1 = arith.constant 0 : index
    %c0_2 = arith.constant 0 : index
    %1 = vector.load %arg4[%c0_1, %c0_2] : memref<384x128xbf16, #tpu.memory_space<vmem>>, vector<384x128xbf16>
    %cst = arith.constant dense<0.000000e+00> : vector<128x128xf32>
    %2 = tpu.matmul %0, %1, %cst {dimension_numbers = #tpu.dot_dimension_numbers<[1], [0], [0], [1], [0, 0, 1, 1], [], []>} : vector<128x384xbf16>, vector<384x128xbf16>, vector<128x128xf32> -> vector<128x128xf32>
    %c0_3 = arith.constant 0 : index
    %c0_4 = arith.constant 0 : index
    %3 = vector.load %arg5[%c0_3, %c0_4] : memref<128x1xf32, #tpu.memory_space<vmem>>, vector<128x1xf32>
    %4 = vector.broadcast %3 : vector<128x1xf32> to vector<128x128xf32>
    %5 = arith.addf %2, %4 : vector<128x128xf32>
    %cst_5 = arith.constant 0.000000e+00 : f32
    %6 = vector.broadcast %cst_5 : f32 to vector<128x128xf32>
    %7 = arith.cmpf oge, %5, %6 : vector<128x128xf32>
    %cst_6 = arith.constant 1.000000e-01 : f32
    %8 = vector.broadcast %cst_6 : f32 to vector<128x128xf32>
    %9 = arith.mulf %8, %5 : vector<128x128xf32>
    %10 = arith.select %7, %5, %9 : vector<128x128xi1>, vector<128x128xf32>
    %11 = arith.truncf %10 : vector<128x128xf32> to vector<128x128xbf16>
    %c0_7 = arith.constant 0 : index
    %c0_8 = arith.constant 0 : index
    %12 = vector.load %arg6[%c0_7, %c0_8] : memref<128x128xbf16, #tpu.memory_space<vmem>>, vector<128x128xbf16>
    tpu.vector_store %arg6[%c0_7, %c0_8], %11 {strides = array<i32>} : memref<128x128xbf16, #tpu.memory_space<vmem>>, vector<128x128xbf16>,
    return
  }
  func.func @transform_0(%arg0: i32, %arg1: i32, %arg2: i32) -> (i32, i32) {
    %c0_i32 = arith.constant 0 : i32
    return %arg0, %arg2 : i32, i32
  }
  func.func @transform_1(%arg0: i32, %arg1: i32, %arg2: i32) -> (i32, i32) {
    %c0_i32 = arith.constant 0 : i32
    return %arg2, %arg1 : i32, i32
  }
  func.func @transform_2(%arg0: i32, %arg1: i32, %arg2: i32) -> (i32, i32) {
    %c0_i32 = arith.constant 0 : i32
    %c0_i32_0 = arith.constant 0 : i32
    return %arg0, %c0_i32 : i32, i32
  }
  func.func @transform_3(%arg0: i32, %arg1: i32, %arg2: i32) -> (i32, i32) {
    %c0_i32 = arith.constant 0 : i32
    return %arg0, %arg1 : i32, i32
  }
}

module attributes {stable_mosaic.version = 11 : i64} {
  func.func @_mm_bias_act_kernel(%arg0: i32, %arg1: i32, %arg2: i32, %arg3: memref<128x640xbf16, #tpu.memory_space<vmem>>, %arg4: memref<640x128xbf16, #tpu.memory_space<vmem>>, %arg5: memref<128x1xf32, #tpu.memory_space<vmem>>, %arg6: memref<128x128xbf16, #tpu.memory_space<vmem>>) attributes {dimension_semantics = [#tpu.dimension_semantics<parallel>, #tpu.dimension_semantics<parallel>, #tpu.dimension_semantics<arbitrary>], iteration_bounds = array<i64: 1, 1, 1>, scalar_prefetch = 0 : i64, scratch_operands = 0 : i64, tpu.core_type = #tpu.core_type<tc>, window_params = [{transform_indices = @transform_0, window_bounds = array<i64: 128, 640>}, {transform_indices = @transform_1, window_bounds = array<i64: 640, 128>}, {transform_indices = @transform_2, window_bounds = array<i64: 128, 1>}, {transform_indices = @transform_3, window_bounds = array<i64: 128, 128>}]} {
    %c0 = arith.constant 0 : index
    %c0_0 = arith.constant 0 : index
    %0 = vector.load %arg3[%c0, %c0_0] : memref<128x640xbf16, #tpu.memory_space<vmem>>, vector<128x640xbf16>
    %c0_1 = arith.constant 0 : index
    %c0_2 = arith.constant 0 : index
    %1 = vector.load %arg4[%c0_1, %c0_2] : memref<640x128xbf16, #tpu.memory_space<vmem>>, vector<640x128xbf16>
    %cst = arith.constant dense<0.000000e+00> : vector<128x128xf32>
    %2 = tpu.matmul %0, %1, %cst {dimension_numbers = #tpu.dot_dimension_numbers<[1], [0], [0], [1], [0, 0, 1, 1], [], []>} : vector<128x640xbf16>, vector<640x128xbf16>, vector<128x128xf32> -> vector<128x128xf32>
    %c0_3 = arith.constant 0 : index
    %c0_4 = arith.constant 0 : index
    %3 = vector.load %arg5[%c0_3, %c0_4] : memref<128x1xf32, #tpu.memory_space<vmem>>, vector<128x1xf32>
    %4 = vector.broadcast %3 : vector<128x1xf32> to vector<128x128xf32>
    %5 = arith.addf %2, %4 : vector<128x128xf32>
    %cst_5 = arith.constant 0.000000e+00 : f32
    %6 = vector.broadcast %cst_5 : f32 to vector<128x128xf32>
    %7 = arith.cmpf oge, %5, %6 : vector<128x128xf32>
    %cst_6 = arith.constant 1.000000e-01 : f32
    %8 = vector.broadcast %cst_6 : f32 to vector<128x128xf32>
    %9 = arith.mulf %8, %5 : vector<128x128xf32>
    %10 = arith.select %7, %5, %9 : vector<128x128xi1>, vector<128x128xf32>
    %11 = arith.truncf %10 : vector<128x128xf32> to vector<128x128xbf16>
    %c0_7 = arith.constant 0 : index
    %c0_8 = arith.constant 0 : index
    %12 = vector.load %arg6[%c0_7, %c0_8] : memref<128x128xbf16, #tpu.memory_space<vmem>>, vector<128x128xbf16>
    tpu.vector_store %arg6[%c0_7, %c0_8], %11 {strides = array<i32>} : memref<128x128xbf16, #tpu.memory_space<vmem>>, vector<128x128xbf16>,
    return
  }
  func.func @transform_0(%arg0: i32, %arg1: i32, %arg2: i32) -> (i32, i32) {
    %c0_i32 = arith.constant 0 : i32
    return %arg0, %arg2 : i32, i32
  }
  func.func @transform_1(%arg0: i32, %arg1: i32, %arg2: i32) -> (i32, i32) {
    %c0_i32 = arith.constant 0 : i32
    return %arg2, %arg1 : i32, i32
  }
  func.func @transform_2(%arg0: i32, %arg1: i32, %arg2: i32) -> (i32, i32) {
    %c0_i32 = arith.constant 0 : i32
    %c0_i32_0 = arith.constant 0 : i32
    return %arg0, %c0_i32 : i32, i32
  }
  func.func @transform_3(%arg0: i32, %arg1: i32, %arg2: i32) -> (i32, i32) {
    %c0_i32 = arith.constant 0 : i32
    return %arg0, %arg1 : i32, i32
  }
}

module attributes {stable_mosaic.version = 11 : i64} {
  func.func @_mm_bias_act_kernel(%arg0: i32, %arg1: i32, %arg2: i32, %arg3: memref<16x384xbf16, #tpu.memory_space<vmem>>, %arg4: memref<384x128xbf16, #tpu.memory_space<vmem>>, %arg5: memref<16x1xf32, #tpu.memory_space<vmem>>, %arg6: memref<16x128xf32, #tpu.memory_space<vmem>>) attributes {dimension_semantics = [#tpu.dimension_semantics<parallel>, #tpu.dimension_semantics<parallel>, #tpu.dimension_semantics<arbitrary>], iteration_bounds = array<i64: 1, 1, 1>, scalar_prefetch = 0 : i64, scratch_operands = 0 : i64, tpu.core_type = #tpu.core_type<tc>, window_params = [{transform_indices = @transform_0, window_bounds = array<i64: 16, 384>}, {transform_indices = @transform_1, window_bounds = array<i64: 384, 128>}, {transform_indices = @transform_2, window_bounds = array<i64: 16, 1>}, {transform_indices = @transform_3, window_bounds = array<i64: 16, 128>}]} {
    %c0 = arith.constant 0 : index
    %c0_0 = arith.constant 0 : index
    %0 = vector.load %arg3[%c0, %c0_0] : memref<16x384xbf16, #tpu.memory_space<vmem>>, vector<16x384xbf16>
    %c0_1 = arith.constant 0 : index
    %c0_2 = arith.constant 0 : index
    %1 = vector.load %arg4[%c0_1, %c0_2] : memref<384x128xbf16, #tpu.memory_space<vmem>>, vector<384x128xbf16>
    %cst = arith.constant dense<0.000000e+00> : vector<16x128xf32>
    %2 = tpu.matmul %0, %1, %cst {dimension_numbers = #tpu.dot_dimension_numbers<[1], [0], [0], [1], [0, 0, 1, 1], [], []>} : vector<16x384xbf16>, vector<384x128xbf16>, vector<16x128xf32> -> vector<16x128xf32>
    %c0_3 = arith.constant 0 : index
    %c0_4 = arith.constant 0 : index
    %3 = vector.load %arg5[%c0_3, %c0_4] : memref<16x1xf32, #tpu.memory_space<vmem>>, vector<16x1xf32>
    %4 = vector.broadcast %3 : vector<16x1xf32> to vector<16x128xf32>
    %5 = arith.addf %2, %4 : vector<16x128xf32>
    %c0_5 = arith.constant 0 : index
    %c0_6 = arith.constant 0 : index
    %6 = vector.load %arg6[%c0_5, %c0_6] : memref<16x128xf32, #tpu.memory_space<vmem>>, vector<16x128xf32>
    tpu.vector_store %arg6[%c0_5, %c0_6], %5 {strides = array<i32>} : memref<16x128xf32, #tpu.memory_space<vmem>>, vector<16x128xf32>,
    return
  }
  func.func @transform_0(%arg0: i32, %arg1: i32, %arg2: i32) -> (i32, i32) {
    %c0_i32 = arith.constant 0 : i32
    return %arg0, %arg2 : i32, i32
  }
  func.func @transform_1(%arg0: i32, %arg1: i32, %arg2: i32) -> (i32, i32) {
    %c0_i32 = arith.constant 0 : i32
    return %arg2, %arg1 : i32, i32
  }
  func.func @transform_2(%arg0: i32, %arg1: i32, %arg2: i32) -> (i32, i32) {
    %c0_i32 = arith.constant 0 : i32
    %c0_i32_0 = arith.constant 0 : i32
    return %arg0, %c0_i32 : i32, i32
  }
  func.func @transform_3(%arg0: i32, %arg1: i32, %arg2: i32) -> (i32, i32) {
    %c0_i32 = arith.constant 0 : i32
    return %arg0, %arg1 : i32, i32
  }
}

</mosaic_0001>

<llo_original>
// kernel: fwd.24
$region0: #{fwd.24}
  #allocation0 [shape = 'u32[]', space=smem, size = 0x4, offset = 0x4, fixed_abs, tag = 'smem constant byte address 0x4 - core index']
  #allocation1 [shape = 'u32[144,128]{1,0:T(1,128)}', space=vmem, size = 0x12000, scoped, tag = 'internal scratch']
  %s0 = inlined_call_operand.vmem [shape: bf16[16,16], index: 0, kind: input, shape index: {}]
  %s1 = inlined_call_operand.vmem [shape: bf16[16,128], index: 1, kind: input, shape index: {}]
  %s2 = inlined_call_operand.vmem [shape: f32[16,1], index: 2, kind: input, shape index: {}]
  %s3 = inlined_call_operand.vmem [shape: bf16[16,128], index: 3, kind: output, shape index: {}]
  %s4 = sld [smem:[#allocation0]]
  $region22: #{fwd.24} parent=0
    _
  %s6 = ssub.s32 1, %s4
  %s7 = scalar_select 0, %s6, %s4
  // Predicated region
  $region2: #{fwd.24} parent=0 // pred_check
    _
  $region3: #{fwd.24} parent=0 // pred_check_branch
    %9 = sbr.rel (0) target = $region5
  $region4: #{fwd.24} parent=0 // pred_region
    _
  $region5: #{fwd.24} parent=0 // pred_fallthru
    _
  // Predicated region
  $region6: #{fwd.24} parent=0 // pred_check
    _
  $region7: #{fwd.24} parent=0 // pred_check_branch
    %11 = sbr.rel (0) target = $region9
  $region8: #{fwd.24} parent=0 // pred_region
    _
  $region9: #{fwd.24} parent=0 // pred_fallthru
    _
  // Predicated region
  $region10: #{fwd.24} parent=0 // pred_check
    _
  $region11: #{fwd.24} parent=0 // pred_check_branch
    %13 = sbr.rel (0) target = $region13
  $region12: #{fwd.24} parent=0 // pred_region
    _
  $region13: #{fwd.24} parent=0 // pred_fallthru
    _
  %v15 = vld [vmem:[%s0] sm:$0xf]
  %v16 = vld [vmem:[%s0 + $0x4] sm:$0xf]
  %v17 = vld [vmem:[%s1] sm:$0xf]
  %v18 = vld [vmem:[%s1 + $0x4] sm:$0xf]
  %v19 = vld [vmem:[%s2] sm:$0xff]
  %v20 = vld [vmem:[%s2 + $0x8] sm:$0xff]
  %22 = vset.pattern.permute.xlu0 0
  %23 = vperm.xlu0 %22, %v19
  %v24 = vpop.permute.xlu0 %23
  %27 = vset.pattern.permute.xlu0 0
  %28 = vperm.xlu0 %27, %v20
  %v29 = vpop.permute.xlu0 %28
  %v33 = vunpack.c.l.b16 %v15
  %v34 = vunpack.c.l.b16 %v16
  %v35 = vpack.c.b16 %v34, %v33
  %v38 = vunpack.c.l.b16 %v17
  %v39 = vunpack.c.l.b16 %v18
  %v40 = vpack.c.b16 %v39, %v38
  %vm42 = vcmask 130048
  %v44 = vsel %vm42, %v35, 0
  %46 = vmatprep.subr.bf16.mxu0 0
  %47 = vmatpush1.bf16.msra.mxu0 %v40
  %48 = vmatprep.subr.bf16.mxu0 0
  %49 = vmatpush1.bf16.msra.mxu0 0
  %50 = vmatprep.subr.bf16.mxu0 0
  %51 = vmatpush1.bf16.msra.mxu0 0
  %52 = vmatprep.subr.bf16.mxu0 0
  %53 = vmatpush1.bf16.msra.mxu0 0
  %54 = vmatprep.subr.bf16.mxu0 0
  %55 = vmatpush1.bf16.msra.mxu0 0
  %56 = vmatprep.subr.bf16.mxu0 0
  %57 = vmatpush1.bf16.msra.mxu0 0
  %58 = vmatprep.subr.bf16.mxu0 0
  %59 = vmatpush1.bf16.msra.mxu0 0
  %60 = vmatprep.subr.bf16.mxu0 0
  %61 = vmatpush1.bf16.msra.mxu0 0
  %62 = vmatprep.subr.bf16.mxu0 0
  %63 = vmatpush1.bf16.msra.mxu0 0
  %64 = vmatprep.subr.bf16.mxu0 0
  %65 = vmatpush1.bf16.msra.mxu0 0
  %66 = vmatprep.subr.bf16.mxu0 0
  %67 = vmatpush1.bf16.msra.mxu0 0
  %68 = vmatprep.subr.bf16.mxu0 0
  %69 = vmatpush1.bf16.msra.mxu0 0
  %70 = vmatprep.subr.bf16.mxu0 0
  %71 = vmatpush1.bf16.msra.mxu0 0
  %72 = vmatprep.subr.bf16.mxu0 0
  %73 = vmatpush1.bf16.msra.mxu0 0
  %74 = vmatprep.subr.bf16.mxu0 0
  %75 = vmatpush1.bf16.msra.mxu0 0
  %76 = vmatprep.subr.bf16.mxu0 0
  %77 = vmatpush1.bf16.msra.mxu0 0
  %78 = vmatprep.mubr.bf16.mxu0 0
  %79 = vmatmul.mubr.bf16.gmra.mrb[0].mxu0 %v44
  %v80 = vpop.f32.mrb[0].mxu0
  %v81 = vadd.f32 %v24, %v80
  %v82 = vpop.f32.mrb[0].mxu0
  %v83 = vpop.f32.mrb[0].mxu0
  %v84 = vadd.f32 %v29, %v83
  %v85 = vpop.f32.mrb[0].mxu0
  %86 = vdwg.mxu0
  %vm87 = vcmp.ge.f32.partialorder %v81, 0.0
  %vm88 = vcmp.ge.f32.partialorder %v84, 0.0
  %v89 = vmul.f32 %v81, 0.1
  %v90 = vmul.f32 %v84, 0.1
  %v91 = vsel %vm87, %v81, %v89
  %v92 = vsel %vm88, %v84, %v90
  %v93 = vpack.c.bf16 %v92, %v91
  %v95 = vunpack.c.l.b16 %v93
  %v96 = vunpack.c.h.b16 %v93
  %v97 = vpack.c.b16 %v95, %v95
  %v98 = vpack.c.b16 %v96, %v96
  %101 = vst [vmem:[%s3] sm:$0xf] %v97
  %102 = vst [vmem:[%s3 + $0x4] sm:$0xf] %v98
  // Predicated region
  $region14: #{fwd.24} parent=0 // pred_check
    _
  $region15: #{fwd.24} parent=0 // pred_check_branch
    %104 = sbr.rel (0) target = $region17
  $region16: #{fwd.24} parent=0 // pred_region
    _
  $region17: #{fwd.24} parent=0 // pred_fallthru
    _
  // Predicated region
  $region18: #{fwd.24} parent=0 // pred_check
    _
  $region19: #{fwd.24} parent=0 // pred_check_branch
    %106 = sbr.rel (0) target = $region21
  $region20: #{fwd.24} parent=0 // pred_region
    _
  $region21: #{fwd.24} parent=0 // pred_fallthru
    _

// kernel: fwd.25
$region0: #{fwd.25}
  #allocation0 [shape = 'u32[]', space=smem, size = 0x4, offset = 0x4, fixed_abs, tag = 'smem constant byte address 0x4 - core index']
  #allocation1 [shape = 'u32[144,128]{1,0:T(1,128)}', space=vmem, size = 0x12000, scoped, tag = 'internal scratch']
  %s0 = inlined_call_operand.vmem [shape: bf16[16,32], index: 0, kind: input, shape index: {}]
  %s1 = inlined_call_operand.vmem [shape: bf16[32,128], index: 1, kind: input, shape index: {}]
  %s2 = inlined_call_operand.vmem [shape: f32[16,1], index: 2, kind: input, shape index: {}]
  %s3 = inlined_call_operand.vmem [shape: bf16[16,128], index: 3, kind: output, shape index: {}]
  %s4 = sld [smem:[#allocation0]]
  $region22: #{fwd.25} parent=0
    _
  %s6 = ssub.s32 1, %s4
  %s7 = scalar_select 0, %s6, %s4
  // Predicated region
  $region2: #{fwd.25} parent=0 // pred_check
    _
  $region3: #{fwd.25} parent=0 // pred_check_branch
    %9 = sbr.rel (0) target = $region5
  $region4: #{fwd.25} parent=0 // pred_region
    _
  $region5: #{fwd.25} parent=0 // pred_fallthru
    _
  // Predicated region
  $region6: #{fwd.25} parent=0 // pred_check
    _
  $region7: #{fwd.25} parent=0 // pred_check_branch
    %11 = sbr.rel (0) target = $region9
  $region8: #{fwd.25} parent=0 // pred_region
    _
  $region9: #{fwd.25} parent=0 // pred_fallthru
    _
  // Predicated region
  $region10: #{fwd.25} parent=0 // pred_check
    _
  $region11: #{fwd.25} parent=0 // pred_check_branch
    %13 = sbr.rel (0) target = $region13
  $region12: #{fwd.25} parent=0 // pred_region
    _
  $region13: #{fwd.25} parent=0 // pred_fallthru
    _
  %v15 = vld [vmem:[%s0] sm:$0xf]
  %v16 = vld [vmem:[%s0 + $0x4] sm:$0xf]
  %v17 = vld [vmem:[%s1] sm:$0xf]
  %v18 = vld [vmem:[%s1 + $0x4] sm:$0xf]
  %v19 = vld [vmem:[%s1 + $0x8] sm:$0xf]
  %v20 = vld [vmem:[%s1 + $0xc] sm:$0xf]
  %v21 = vld [vmem:[%s2] sm:$0xff]
  %v22 = vld [vmem:[%s2 + $0x8] sm:$0xff]
  %24 = vset.pattern.permute.xlu0 0
  %25 = vperm.xlu0 %24, %v21
  %v26 = vpop.permute.xlu0 %25
  %29 = vset.pattern.permute.xlu0 0
  %30 = vperm.xlu0 %29, %v22
  %v31 = vpop.permute.xlu0 %30
  %v35 = vunpack.c.l.b16 %v15
  %v36 = vunpack.c.l.b16 %v16
  %v37 = vpack.c.b16 %v36, %v35
  %v42 = vunpack.c.l.b16 %v17
  %v43 = vunpack.c.l.b16 %v18
  %v44 = vunpack.c.l.b16 %v19
  %v45 = vunpack.c.l.b16 %v20
  %v46 = vpack.c.b16 %v43, %v42
  %v47 = vpack.c.b16 %v45, %v44
  %vm50 = vcmask 261120
  %v52 = vsel %vm50, %v37, 0
  %54 = vmatprep.subr.bf16.mxu0 0
  %55 = vmatpush1.bf16.msra.mxu0 %v46
  %56 = vmatprep.subr.bf16.mxu0 0
  %57 = vmatpush1.bf16.msra.mxu0 %v47
  %58 = vmatprep.subr.bf16.mxu0 0
  %59 = vmatpush1.bf16.msra.mxu0 0
  %60 = vmatprep.subr.bf16.mxu0 0
  %61 = vmatpush1.bf16.msra.mxu0 0
  %62 = vmatprep.subr.bf16.mxu0 0
  %63 = vmatpush1.bf16.msra.mxu0 0
  %64 = vmatprep.subr.bf16.mxu0 0
  %65 = vmatpush1.bf16.msra.mxu0 0
  %66 = vmatprep.subr.bf16.mxu0 0
  %67 = vmatpush1.bf16.msra.mxu0 0
  %68 = vmatprep.subr.bf16.mxu0 0
  %69 = vmatpush1.bf16.msra.mxu0 0
  %70 = vmatprep.subr.bf16.mxu0 0
  %71 = vmatpush1.bf16.msra.mxu0 0
  %72 = vmatprep.subr.bf16.mxu0 0
  %73 = vmatpush1.bf16.msra.mxu0 0
  %74 = vmatprep.subr.bf16.mxu0 0
  %75 = vmatpush1.bf16.msra.mxu0 0
  %76 = vmatprep.subr.bf16.mxu0 0
  %77 = vmatpush1.bf16.msra.mxu0 0
  %78 = vmatprep.subr.bf16.mxu0 0
  %79 = vmatpush1.bf16.msra.mxu0 0
  %80 = vmatprep.subr.bf16.mxu0 0
  %81 = vmatpush1.bf16.msra.mxu0 0
  %82 = vmatprep.subr.bf16.mxu0 0
  %83 = vmatpush1.bf16.msra.mxu0 0
  %84 = vmatprep.subr.bf16.mxu0 0
  %85 = vmatpush1.bf16.msra.mxu0 0
  %86 = vmatprep.mubr.bf16.mxu0 0
  %87 = vmatmul.mubr.bf16.gmra.mrb[0].mxu0 %v52
  %v88 = vpop.f32.mrb[0].mxu0
  %v89 = vadd.f32 %v26, %v88
  %v90 = vpop.f32.mrb[0].mxu0
  %v91 = vpop.f32.mrb[0].mxu0
  %v92 = vadd.f32 %v31, %v91
  %v93 = vpop.f32.mrb[0].mxu0
  %94 = vdwg.mxu0
  %vm95 = vcmp.ge.f32.partialorder %v89, 0.0
  %vm96 = vcmp.ge.f32.partialorder %v92, 0.0
  %v97 = vmul.f32 %v89, 0.1
  %v98 = vmul.f32 %v92, 0.1
  %v99 = vsel %vm95, %v89, %v97
  %v100 = vsel %vm96, %v92, %v98
  %v101 = vpack.c.bf16 %v100, %v99
  %v103 = vunpack.c.l.b16 %v101
  %v104 = vunpack.c.h.b16 %v101
  %v105 = vpack.c.b16 %v103, %v103
  %v106 = vpack.c.b16 %v104, %v104
  %109 = vst [vmem:[%s3] sm:$0xf] %v105
  %110 = vst [vmem:[%s3 + $0x4] sm:$0xf] %v106
  // Predicated region
  $region14: #{fwd.25} parent=0 // pred_check
    _
  $region15: #{fwd.25} parent=0 // pred_check_branch
    %112 = sbr.rel (0) target = $region17
  $region16: #{fwd.25} parent=0 // pred_region
    _
  $region17: #{fwd.25} parent=0 // pred_fallthru
    _
  // Predicated region
  $region18: #{fwd.25} parent=0 // pred_check
    _
  $region19: #{fwd.25} parent=0 // pred_check_branch
    %114 = sbr.rel (0) target = $region21
  $region20: #{fwd.25} parent=0 // pred_region
    _
  $region21: #{fwd.25} parent=0 // pred_fallthru
    _

// kernel: fwd.26
$region0: #{fwd.26}
  #allocation0 [shape = 'u32[]', space=smem, size = 0x4, offset = 0x4, fixed_abs, tag = 'smem constant byte address 0x4 - core index']
  #allocation1 [shape = 'u32[144,128]{1,0:T(1,128)}', space=vmem, size = 0x12000, scoped, tag = 'internal scratch']
  %s0 = inlined_call_operand.vmem [shape: bf16[64,80], index: 0, kind: input, shape index: {}]
  %s1 = inlined_call_operand.vmem [shape: bf16[80,128], index: 1, kind: input, shape index: {}]
  %s2 = inlined_call_operand.vmem [shape: f32[64,1], index: 2, kind: input, shape index: {}]
  %s3 = inlined_call_operand.vmem [shape: bf16[64,128], index: 3, kind: output, shape index: {}]
  %s4 = sld [smem:[#allocation0]]
  $region22: #{fwd.26} parent=0
    _
  %s6 = ssub.s32 1, %s4
  %s7 = scalar_select 0, %s6, %s4
  // Predicated region
  $region2: #{fwd.26} parent=0 // pred_check
    _
  $region3: #{fwd.26} parent=0 // pred_check_branch
    %9 = sbr.rel (0) target = $region5
  $region4: #{fwd.26} parent=0 // pred_region
    _
  $region5: #{fwd.26} parent=0 // pred_fallthru
    _
  // Predicated region
  $region6: #{fwd.26} parent=0 // pred_check
    _
  $region7: #{fwd.26} parent=0 // pred_check_branch
    %11 = sbr.rel (0) target = $region9
  $region8: #{fwd.26} parent=0 // pred_region
    _
  $region9: #{fwd.26} parent=0 // pred_fallthru
    _
  // Predicated region
  $region10: #{fwd.26} parent=0 // pred_check
    _
  $region11: #{fwd.26} parent=0 // pred_check_branch
    %13 = sbr.rel (0) target = $region13
  $region12: #{fwd.26} parent=0 // pred_region
    _
  $region13: #{fwd.26} parent=0 // pred_fallthru
    _
  %v15 = vld [vmem:[%s0] sm:$0xf]
  %v16 = vld [vmem:[%s0 + $0x4] sm:$0xf]
  %v17 = vld [vmem:[%s0 + $0x8] sm:$0xf]
  %v18 = vld [vmem:[%s0 + $0xc] sm:$0xf]
  %v19 = vld [vmem:[%s0 + $0x10] sm:$0xf]
  %v20 = vld [vmem:[%s0 + $0x14] sm:$0xf]
  %v21 = vld [vmem:[%s0 + $0x18] sm:$0xf]
  %v22 = vld [vmem:[%s0 + $0x1c] sm:$0xf]
  %v23 = vld [vmem:[%s1] sm:$0xf]
  %v24 = vld [vmem:[%s1 + $0x4] sm:$0xf]
  %v25 = vld [vmem:[%s1 + $0x8] sm:$0xf]
  %v26 = vld [vmem:[%s1 + $0xc] sm:$0xf]
  %v27 = vld [vmem:[%s1 + $0x10] sm:$0xf]
  %v28 = vld [vmem:[%s1 + $0x14] sm:$0xf]
  %v29 = vld [vmem:[%s1 + $0x18] sm:$0xf]
  %v30 = vld [vmem:[%s1 + $0x1c] sm:$0xf]
  %v31 = vld [vmem:[%s1 + $0x20] sm:$0xf]
  %v32 = vld [vmem:[%s1 + $0x24] sm:$0xf]
  %v33 = vld [vmem:[%s2] sm:$0xff]
  %v34 = vld [vmem:[%s2 + $0x8] sm:$0xff]
  %v35 = vld [vmem:[%s2 + $0x10] sm:$0xff]
  %v36 = vld [vmem:[%s2 + $0x18] sm:$0xff]
  %v37 = vld [vmem:[%s2 + $0x20] sm:$0xff]
  %v38 = vld [vmem:[%s2 + $0x28] sm:$0xff]
  %v39 = vld [vmem:[%s2 + $0x30] sm:$0xff]
  %v40 = vld [vmem:[%s2 + $0x38] sm:$0xff]
  %42 = vset.pattern.permute.xlu0 0
  %43 = vperm.xlu0 %42, %v33
  %v44 = vpop.permute.xlu0 %43
  %47 = vset.pattern.permute.xlu0 0
  %48 = vperm.xlu0 %47, %v34
  %v49 = vpop.permute.xlu0 %48
  %52 = vset.pattern.permute.xlu0 0
  %53 = vperm.xlu0 %52, %v35
  %v54 = vpop.permute.xlu0 %53
  %57 = vset.pattern.permute.xlu0 0
  %58 = vperm.xlu0 %57, %v36
  %v59 = vpop.permute.xlu0 %58
  %62 = vset.pattern.permute.xlu0 0
  %63 = vperm.xlu0 %62, %v37
  %v64 = vpop.permute.xlu0 %63
  %67 = vset.pattern.permute.xlu0 0
  %68 = vperm.xlu0 %67, %v38
  %v69 = vpop.permute.xlu0 %68
  %72 = vset.pattern.permute.xlu0 0
  %73 = vperm.xlu0 %72, %v39
  %v74 = vpop.permute.xlu0 %73
  %77 = vset.pattern.permute.xlu0 0
  %78 = vperm.xlu0 %77, %v40
  %v79 = vpop.permute.xlu0 %78
  %v89 = vunpack.c.l.b16 %v15
  %v90 = vunpack.c.l.b16 %v16
  %v91 = vunpack.c.l.b16 %v17
  %v92 = vunpack.c.l.b16 %v18
  %v93 = vunpack.c.l.b16 %v19
  %v94 = vunpack.c.l.b16 %v20
  %v95 = vunpack.c.l.b16 %v21
  %v96 = vunpack.c.l.b16 %v22
  %v97 = vpack.c.b16 %v90, %v89
  %v98 = vpack.c.b16 %v92, %v91
  %v99 = vpack.c.b16 %v94, %v93
  %v100 = vpack.c.b16 %v96, %v95
  %v111 = vunpack.c.l.b16 %v23
  %v112 = vunpack.c.l.b16 %v24
  %v113 = vunpack.c.l.b16 %v25
  %v114 = vunpack.c.l.b16 %v26
  %v115 = vunpack.c.l.b16 %v27
  %v116 = vunpack.c.l.b16 %v28
  %v117 = vunpack.c.l.b16 %v29
  %v118 = vunpack.c.l.b16 %v30
  %v119 = vunpack.c.l.b16 %v31
  %v120 = vunpack.c.l.b16 %v32
  %v121 = vpack.c.b16 %v112, %v111
  %v122 = vpack.c.b16 %v114, %v113
  %v123 = vpack.c.b16 %v116, %v115
  %v124 = vpack.c.b16 %v118, %v117
  %v125 = vpack.c.b16 %v120, %v119
  %vm131 = vcmask 654336
  %v133 = vsel %vm131, %v97, 0
  %v136 = vsel %vm131, %v98, 0
  %v139 = vsel %vm131, %v99, 0
  %v142 = vsel %vm131, %v100, 0
  %144 = vmatprep.subr.bf16.mxu0 0
  %145 = vmatpush1.bf16.msra.mxu0 %v121
  %146 = vmatprep.subr.bf16.mxu0 0
  %147 = vmatpush1.bf16.msra.mxu0 %v122
  %148 = vmatprep.subr.bf16.mxu0 0
  %149 = vmatpush1.bf16.msra.mxu0 %v123
  %150 = vmatprep.subr.bf16.mxu0 0
  %151 = vmatpush1.bf16.msra.mxu0 %v124
  %152 = vmatprep.subr.bf16.mxu0 0
  %153 = vmatpush1.bf16.msra.mxu0 %v125
  %154 = vmatprep.subr.bf16.mxu0 0
  %155 = vmatpush1.bf16.msra.mxu0 0
  %156 = vmatprep.subr.bf16.mxu0 0
  %157 = vmatpush1.bf16.msra.mxu0 0
  %158 = vmatprep.subr.bf16.mxu0 0
  %159 = vmatpush1.bf16.msra.mxu0 0
  %160 = vmatprep.subr.bf16.mxu0 0
  %161 = vmatpush1.bf16.msra.mxu0 0
  %162 = vmatprep.subr.bf16.mxu0 0
  %163 = vmatpush1.bf16.msra.mxu0 0
  %164 = vmatprep.subr.bf16.mxu0 0
  %165 = vmatpush1.bf16.msra.mxu0 0
  %166 = vmatprep.subr.bf16.mxu0 0
  %167 = vmatpush1.bf16.msra.mxu0 0
  %168 = vmatprep.subr.bf16.mxu0 0
  %169 = vmatpush1.bf16.msra.mxu0 0
  %170 = vmatprep.subr.bf16.mxu0 0
  %171 = vmatpush1.bf16.msra.mxu0 0
  %172 = vmatprep.subr.bf16.mxu0 0
  %173 = vmatpush1.bf16.msra.mxu0 0
  %174 = vmatprep.subr.bf16.mxu0 0
  %175 = vmatpush1.bf16.msra.mxu0 0
  %176 = vmatprep.mubr.bf16.mxu0 0
  %177 = vmatmul.mubr.bf16.gmra.mrb[0].mxu0 %v133
  %v178 = vpop.f32.mrb[0].mxu0
  %v179 = vadd.f32 %v44, %v178
  %v180 = vpop.f32.mrb[0].mxu0
  %v181 = vpop.f32.mrb[0].mxu0
  %v182 = vadd.f32 %v49, %v181
  %v183 = vpop.f32.mrb[0].mxu0
  %184 = vmatprep.mubr.bf16.mxu0 0
  %185 = vmatmul.mubr.bf16.gmra.mrb[0].mxu0 %v136
  %v186 = vpop.f32.mrb[0].mxu0
  %v187 = vadd.f32 %v54, %v186
  %v188 = vpop.f32.mrb[0].mxu0
  %v189 = vpop.f32.mrb[0].mxu0
  %v190 = vadd.f32 %v59, %v189
  %v191 = vpop.f32.mrb[0].mxu0
  %192 = vmatprep.mubr.bf16.mxu0 0
  %193 = vmatmul.mubr.bf16.gmra.mrb[0].mxu0 %v139
  %v194 = vpop.f32.mrb[0].mxu0
  %v195 = vadd.f32 %v64, %v194
  %v196 = vpop.f32.mrb[0].mxu0
  %v197 = vpop.f32.mrb[0].mxu0
  %v198 = vadd.f32 %v69, %v197
  %v199 = vpop.f32.mrb[0].mxu0
  %200 = vmatprep.mubr.bf16.mxu0 0
  %201 = vmatmul.mubr.bf16.gmra.mrb[0].mxu0 %v142
  %v202 = vpop.f32.mrb[0].mxu0
  %v203 = vadd.f32 %v74, %v202
  %v204 = vpop.f32.mrb[0].mxu0
  %v205 = vpop.f32.mrb[0].mxu0
  %v206 = vadd.f32 %v79, %v205
  %v207 = vpop.f32.mrb[0].mxu0
  %208 = vdwg.mxu0
  %vm209 = vcmp.ge.f32.partialorder %v179, 0.0
  %vm210 = vcmp.ge.f32.partialorder %v182, 0.0
  %vm211 = vcmp.ge.f32.partialorder %v187, 0.0
  %vm212 = vcmp.ge.f32.partialorder %v190, 0.0
  %vm213 = vcmp.ge.f32.partialorder %v195, 0.0
  %vm214 = vcmp.ge.f32.partialorder %v198, 0.0
  %vm215 = vcmp.ge.f32.partialorder %v203, 0.0
  %vm216 = vcmp.ge.f32.partialorder %v206, 0.0
  %v217 = vmul.f32 %v179, 0.1
  %v218 = vmul.f32 %v182, 0.1
  %v219 = vmul.f32 %v187, 0.1
  %v220 = vmul.f32 %v190, 0.1
  %v221 = vmul.f32 %v195, 0.1
  %v222 = vmul.f32 %v198, 0.1
  %v223 = vmul.f32 %v203, 0.1
  %v224 = vmul.f32 %v206, 0.1
  %v225 = vsel %vm209, %v179, %v217
  %v226 = vsel %vm210, %v182, %v218
  %v227 = vsel %vm211, %v187, %v219
  %v228 = vsel %vm212, %v190, %v220
  %v229 = vsel %vm213, %v195, %v221
  %v230 = vsel %vm214, %v198, %v222
  %v231 = vsel %vm215, %v203, %v223
  %v232 = vsel %vm216, %v206, %v224
  %v233 = vpack.c.bf16 %v226, %v225
  %v234 = vpack.c.bf16 %v228, %v227
  %v235 = vpack.c.bf16 %v230, %v229
  %v236 = vpack.c.bf16 %v232, %v231
  %v241 = vunpack.c.l.b16 %v233
  %v242 = vunpack.c.h.b16 %v233
  %v243 = vunpack.c.l.b16 %v234
  %v244 = vunpack.c.h.b16 %v234
  %v245 = vunpack.c.l.b16 %v235
  %v246 = vunpack.c.h.b16 %v235
  %v247 = vunpack.c.l.b16 %v236
  %v248 = vunpack.c.h.b16 %v236
  %v249 = vpack.c.b16 %v241, %v241
  %v250 = vpack.c.b16 %v242, %v242
  %v251 = vpack.c.b16 %v243, %v243
  %v252 = vpack.c.b16 %v244, %v244
  %v253 = vpack.c.b16 %v245, %v245
  %v254 = vpack.c.b16 %v246, %v246
  %v255 = vpack.c.b16 %v247, %v247
  %v256 = vpack.c.b16 %v248, %v248
  %265 = vst [vmem:[%s3] sm:$0xf] %v249
  %266 = vst [vmem:[%s3 + $0x4] sm:$0xf] %v250
  %267 = vst [vmem:[%s3 + $0x8] sm:$0xf] %v251
  %268 = vst [vmem:[%s3 + $0xc] sm:$0xf] %v252
  %269 = vst [vmem:[%s3 + $0x10] sm:$0xf] %v253
  %270 = vst [vmem:[%s3 + $0x14] sm:$0xf] %v254
  %271 = vst [vmem:[%s3 + $0x18] sm:$0xf] %v255
  %272 = vst [vmem:[%s3 + $0x1c] sm:$0xf] %v256
  // Predicated region
  $region14: #{fwd.26} parent=0 // pred_check
    _
  $region15: #{fwd.26} parent=0 // pred_check_branch
    %274 = sbr.rel (0) target = $region17
  $region16: #{fwd.26} parent=0 // pred_region
    _
  $region17: #{fwd.26} parent=0 // pred_fallthru
    _
  // Predicated region
  $region18: #{fwd.26} parent=0 // pred_check
    _
  $region19: #{fwd.26} parent=0 // pred_check_branch
    %276 = sbr.rel (0) target = $region21
  $region20: #{fwd.26} parent=0 // pred_region
    _
  $region21: #{fwd.26} parent=0 // pred_fallthru
    _

// kernel: fwd.27
$region0: #{fwd.27}
  #allocation0 [shape = 'u32[]', space=smem, size = 0x4, offset = 0x4, fixed_abs, tag = 'smem constant byte address 0x4 - core index']
  #allocation1 [shape = 'u32[144,128]{1,0:T(1,128)}', space=vmem, size = 0x12000, scoped, tag = 'internal scratch']
  %s0 = inlined_call_operand.vmem [shape: bf16[128,384], index: 0, kind: input, shape index: {}]
  %s1 = inlined_call_operand.vmem [shape: bf16[384,128], index: 1, kind: input, shape index: {}]
  %s2 = inlined_call_operand.vmem [shape: f32[128,1], index: 2, kind: input, shape index: {}]
  %s3 = inlined_call_operand.vmem [shape: bf16[128,128], index: 3, kind: output, shape index: {}]
  %s4 = sld [smem:[#allocation0]]
  $region22: #{fwd.27} parent=0
    _
  %s6 = ssub.s32 1, %s4
  %s7 = scalar_select 0, %s6, %s4
  // Predicated region
  $region2: #{fwd.27} parent=0 // pred_check
    _
  $region3: #{fwd.27} parent=0 // pred_check_branch
    %9 = sbr.rel (0) target = $region5
  $region4: #{fwd.27} parent=0 // pred_region
    _
  $region5: #{fwd.27} parent=0 // pred_fallthru
    _
  // Predicated region
  $region6: #{fwd.27} parent=0 // pred_check
    _
  $region7: #{fwd.27} parent=0 // pred_check_branch
    %11 = sbr.rel (0) target = $region9
  $region8: #{fwd.27} parent=0 // pred_region
    _
  $region9: #{fwd.27} parent=0 // pred_fallthru
    _
  // Predicated region
  $region10: #{fwd.27} parent=0 // pred_check
    _
  $region11: #{fwd.27} parent=0 // pred_check_branch
    %13 = sbr.rel (0) target = $region13
  $region12: #{fwd.27} parent=0 // pred_region
    _
  $region13: #{fwd.27} parent=0 // pred_fallthru
    _
  %v15 = vld [vmem:[%s0] sm:$0xff]
  %v16 = vld [vmem:[%s0 + $0x8] sm:$0xf]
  %v17 = vld [vmem:[%s0 + $0xc] sm:$0xff]
  %v18 = vld [vmem:[%s0 + $0x14] sm:$0xf]
  %v19 = vld [vmem:[%s0 + $0x18] sm:$0xff]
  %v20 = vld [vmem:[%s0 + $0x20] sm:$0xf]
  %v21 = vld [vmem:[%s0 + $0x24] sm:$0xff]
  %v22 = vld [vmem:[%s0 + $0x2c] sm:$0xf]
  %v23 = vld [vmem:[%s0 + $0x30] sm:$0xff]
  %v24 = vld [vmem:[%s0 + $0x38] sm:$0xf]
  %v25 = vld [vmem:[%s0 + $0x3c] sm:$0xff]
  %v26 = vld [vmem:[%s0 + $0x44] sm:$0xf]
  %v27 = vld [vmem:[%s0 + $0x48] sm:$0xff]
  %v28 = vld [vmem:[%s0 + $0x50] sm:$0xf]
  %v29 = vld [vmem:[%s0 + $0x54] sm:$0xff]
  %v30 = vld [vmem:[%s0 + $0x5c] sm:$0xf]
  %v31 = vld [vmem:[%s0 + $0x60] sm:$0xff]
  %v32 = vld [vmem:[%s0 + $0x68] sm:$0xf]
  %v33 = vld [vmem:[%s0 + $0x6c] sm:$0xff]
  %v34 = vld [vmem:[%s0 + $0x74] sm:$0xf]
  %v35 = vld [vmem:[%s0 + $0x78] sm:$0xff]
  %v36 = vld [vmem:[%s0 + $0x80] sm:$0xf]
  %v37 = vld [vmem:[%s0 + $0x84] sm:$0xff]
  %v38 = vld [vmem:[%s0 + $0x8c] sm:$0xf]
  %v39 = vld [vmem:[%s0 + $0x90] sm:$0xff]
  %v40 = vld [vmem:[%s0 + $0x98] sm:$0xf]
  %v41 = vld [vmem:[%s0 + $0x9c] sm:$0xff]
  %v42 = vld [vmem:[%s0 + $0xa4] sm:$0xf]
  %v43 = vld [vmem:[%s0 + $0xa8] sm:$0xff]
  %v44 = vld [vmem:[%s0 + $0xb0] sm:$0xf]
  %v45 = vld [vmem:[%s0 + $0xb4] sm:$0xff]
  %v46 = vld [vmem:[%s0 + $0xbc] sm:$0xf]
  %v47 = vld [vmem:[%s1] sm:$0xf]
  %v48 = vld [vmem:[%s1 + $0x4] sm:$0xf]
  %v49 = vld [vmem:[%s1 + $0x8] sm:$0xf]
  %v50 = vld [vmem:[%s1 + $0xc] sm:$0xf]
  %v51 = vld [vmem:[%s1 + $0x10] sm:$0xf]
  %v52 = vld [vmem:[%s1 + $0x14] sm:$0xf]
  %v53 = vld [vmem:[%s1 + $0x18] sm:$0xf]
  %v54 = vld [vmem:[%s1 + $0x1c] sm:$0xf]
  %v55 = vld [vmem:[%s1 + $0x20] sm:$0xf]
  %v56 = vld [vmem:[%s1 + $0x24] sm:$0xf]
  %v57 = vld [vmem:[%s1 + $0x28] sm:$0xf]
  %v58 = vld [vmem:[%s1 + $0x2c] sm:$0xf]
  %v59 = vld [vmem:[%s1 + $0x30] sm:$0xf]
  %v60 = vld [vmem:[%s1 + $0x34] sm:$0xf]
  %v61 = vld [vmem:[%s1 + $0x38] sm:$0xf]
  %v62 = vld [vmem:[%s1 + $0x3c] sm:$0xf]
  %v63 = vld [vmem:[%s1 + $0x40] sm:$0xf]
  %v64 = vld [vmem:[%s1 + $0x44] sm:$0xf]
  %v65 = vld [vmem:[%s1 + $0x48] sm:$0xf]
  %v66 = vld [vmem:[%s1 + $0x4c] sm:$0xf]
  %v67 = vld [vmem:[%s1 + $0x50] sm:$0xf]
  %v68 = vld [vmem:[%s1 + $0x54] sm:$0xf]
  %v69 = vld [vmem:[%s1 + $0x58] sm:$0xf]
  %v70 = vld [vmem:[%s1 + $0x5c] sm:$0xf]
  %v71 = vld [vmem:[%s1 + $0x60] sm:$0xf]
  %v72 = vld [vmem:[%s1 + $0x64] sm:$0xf]
  %v73 = vld [vmem:[%s1 + $0x68] sm:$0xf]
  %v74 = vld [vmem:[%s1 + $0x6c] sm:$0xf]
  %v75 = vld [vmem:[%s1 + $0x70] sm:$0xf]
  %v76 = vld [vmem:[%s1 + $0x74] sm:$0xf]
  %v77 = vld [vmem:[%s1 + $0x78] sm:$0xf]
  %v78 = vld [vmem:[%s1 + $0x7c] sm:$0xf]
  %v79 = vld [vmem:[%s1 + $0x80] sm:$0xf]
  %v80 = vld [vmem:[%s1 + $0x84] sm:$0xf]
  %v81 = vld [vmem:[%s1 + $0x88] sm:$0xf]
  %v82 = vld [vmem:[%s1 + $0x8c] sm:$0xf]
  %v83 = vld [vmem:[%s1 + $0x90] sm:$0xf]
  %v84 = vld [vmem:[%s1 + $0x94] sm:$0xf]
  %v85 = vld [vmem:[%s1 + $0x98] sm:$0xf]
  %v86 = vld [vmem:[%s1 + $0x9c] sm:$0xf]
  %v87 = vld [vmem:[%s1 + $0xa0] sm:$0xf]
  %v88 = vld [vmem:[%s1 + $0xa4] sm:$0xf]
  %v89 = vld [vmem:[%s1 + $0xa8] sm:$0xf]
  %v90 = vld [vmem:[%s1 + $0xac] sm:$0xf]
  %v91 = vld [vmem:[%s1 + $0xb0] sm:$0xf]
  %v92 = vld [vmem:[%s1 + $0xb4] sm:$0xf]
  %v93 = vld [vmem:[%s1 + $0xb8] sm:$0xf]
  %v94 = vld [vmem:[%s1 + $0xbc] sm:$0xf]
  %v95 = vld [vmem:[%s2] sm:$0xff]
  %v96 = vld [vmem:[%s2 + $0x8] sm:$0xff]
  %v97 = vld [vmem:[%s2 + $0x10] sm:$0xff]
  %v98 = vld [vmem:[%s2 + $0x18] sm:$0xff]
  %v99 = vld [vmem:[%s2 + $0x20] sm:$0xff]
  %v100 = vld [vmem:[%s2 + $0x28] sm:$0xff]
  %v101 = vld [vmem:[%s2 + $0x30] sm:$0xff]
  %v102 = vld [vmem:[%s2 + $0x38] sm:$0xff]
  %v103 = vld [vmem:[%s2 + $0x40] sm:$0xff]
  %v104 = vld [vmem:[%s2 + $0x48] sm:$0xff]
  %v105 = vld [vmem:[%s2 + $0x50] sm:$0xff]
  %v106 = vld [vmem:[%s2 + $0x58] sm:$0xff]
  %v107 = vld [vmem:[%s2 + $0x60] sm:$0xff]
  %v108 = vld [vmem:[%s2 + $0x68] sm:$0xff]
  %v109 = vld [vmem:[%s2 + $0x70] sm:$0xff]
  %v110 = vld [vmem:[%s2 + $0x78] sm:$0xff]
  %112 = vset.pattern.permute.xlu0 0
  %113 = vperm.xlu0 %112, %v95
  %v114 = vpop.permute.xlu0 %113
  %117 = vset.pattern.permute.xlu0 0
  %118 = vperm.xlu0 %117, %v96
  %v119 = vpop.permute.xlu0 %118
  %122 = vset.pattern.permute.xlu0 0
  %123 = vperm.xlu0 %122, %v97
  %v124 = vpop.permute.xlu0 %123
  %127 = vset.pattern.permute.xlu0 0
  %128 = vperm.xlu0 %127, %v98
  %v129 = vpop.permute.xlu0 %128
  %132 = vset.pattern.permute.xlu0 0
  %133 = vperm.xlu0 %132, %v99
  %v134 = vpop.permute.xlu0 %133
  %137 = vset.pattern.permute.xlu0 0
  %138 = vperm.xlu0 %137, %v100
  %v139 = vpop.permute.xlu0 %138
  %142 = vset.pattern.permute.xlu0 0
  %143 = vperm.xlu0 %142, %v101
  %v144 = vpop.permute.xlu0 %143
  %147 = vset.pattern.permute.xlu0 0
  %148 = vperm.xlu0 %147, %v102
  %v149 = vpop.permute.xlu0 %148
  %152 = vset.pattern.permute.xlu0 0
  %153 = vperm.xlu0 %152, %v103
  %v154 = vpop.permute.xlu0 %153
  %157 = vset.pattern.permute.xlu0 0
  %158 = vperm.xlu0 %157, %v104
  %v159 = vpop.permute.xlu0 %158
  %162 = vset.pattern.permute.xlu0 0
  %163 = vperm.xlu0 %162, %v105
  %v164 = vpop.permute.xlu0 %163
  %167 = vset.pattern.permute.xlu0 0
  %168 = vperm.xlu0 %167, %v106
  %v169 = vpop.permute.xlu0 %168
  %172 = vset.pattern.permute.xlu0 0
  %173 = vperm.xlu0 %172, %v107
  %v174 = vpop.permute.xlu0 %173
  %177 = vset.pattern.permute.xlu0 0
  %178 = vperm.xlu0 %177, %v108
  %v179 = vpop.permute.xlu0 %178
  %182 = vset.pattern.permute.xlu0 0
  %183 = vperm.xlu0 %182, %v109
  %v184 = vpop.permute.xlu0 %183
  %187 = vset.pattern.permute.xlu0 0
  %188 = vperm.xlu0 %187, %v110
  %v189 = vpop.permute.xlu0 %188
  %v223 = vunpack.c.l.b16 %v15
  %v224 = vunpack.c.h.b16 %v15
  %v225 = vunpack.c.l.b16 %v16
  %v226 = vunpack.c.l.b16 %v17
  %v227 = vunpack.c.h.b16 %v17
  %v228 = vunpack.c.l.b16 %v18
  %v229 = vunpack.c.l.b16 %v19
  %v230 = vunpack.c.h.b16 %v19
  %v231 = vunpack.c.l.b16 %v20
  %v232 = vunpack.c.l.b16 %v21
  %v233 = vunpack.c.h.b16 %v21
  %v234 = vunpack.c.l.b16 %v22
  %v235 = vunpack.c.l.b16 %v23
  %v236 = vunpack.c.h.b16 %v23
  %v237 = vunpack.c.l.b16 %v24
  %v238 = vunpack.c.l.b16 %v25
  %v239 = vunpack.c.h.b16 %v25
  %v240 = vunpack.c.l.b16 %v26
  %v241 = vunpack.c.l.b16 %v27
  %v242 = vunpack.c.h.b16 %v27
  %v243 = vunpack.c.l.b16 %v28
  %v244 = vunpack.c.l.b16 %v29
  %v245 = vunpack.c.h.b16 %v29
  %v246 = vunpack.c.l.b16 %v30
  %v247 = vunpack.c.l.b16 %v31
  %v248 = vunpack.c.h.b16 %v31
  %v249 = vunpack.c.l.b16 %v32
  %v250 = vunpack.c.l.b16 %v33
  %v251 = vunpack.c.h.b16 %v33
  %v252 = vunpack.c.l.b16 %v34
  %v253 = vunpack.c.l.b16 %v35
  %v254 = vunpack.c.h.b16 %v35
  %v255 = vunpack.c.l.b16 %v36
  %v256 = vunpack.c.l.b16 %v37
  %v257 = vunpack.c.h.b16 %v37
  %v258 = vunpack.c.l.b16 %v38
  %v259 = vunpack.c.l.b16 %v39
  %v260 = vunpack.c.h.b16 %v39
  %v261 = vunpack.c.l.b16 %v40
  %v262 = vunpack.c.l.b16 %v41
  %v263 = vunpack.c.h.b16 %v41
  %v264 = vunpack.c.l.b16 %v42
  %v265 = vunpack.c.l.b16 %v43
  %v266 = vunpack.c.h.b16 %v43
  %v267 = vunpack.c.l.b16 %v44
  %v268 = vunpack.c.l.b16 %v45
  %v269 = vunpack.c.h.b16 %v45
  %v270 = vunpack.c.l.b16 %v46
  %v271 = vpack.c.b16 %v226, %v223
  %v272 = vpack.c.b16 %v227, %v224
  %v273 = vpack.c.b16 %v228, %v225
  %v274 = vpack.c.b16 %v232, %v229
  %v275 = vpack.c.b16 %v233, %v230
  %v276 = vpack.c.b16 %v234, %v231
  %v277 = vpack.c.b16 %v238, %v235
  %v278 = vpack.c.b16 %v239, %v236
  %v279 = vpack.c.b16 %v240, %v237
  %v280 = vpack.c.b16 %v244, %v241
  %v281 = vpack.c.b16 %v245, %v242
  %v282 = vpack.c.b16 %v246, %v243
  %v283 = vpack.c.b16 %v250, %v247
  %v284 = vpack.c.b16 %v251, %v248
  %v285 = vpack.c.b16 %v252, %v249
  %v286 = vpack.c.b16 %v256, %v253
  %v287 = vpack.c.b16 %v257, %v254
  %v288 = vpack.c.b16 %v258, %v255
  %v289 = vpack.c.b16 %v262, %v259
  %v290 = vpack.c.b16 %v263, %v260
  %v291 = vpack.c.b16 %v264, %v261
  %v292 = vpack.c.b16 %v268, %v265
  %v293 = vpack.c.b16 %v269, %v266
  %v294 = vpack.c.b16 %v270, %v267
  %v367 = vunpack.c.l.b16 %v47
  %v368 = vunpack.c.l.b16 %v48
  %v369 = vunpack.c.l.b16 %v49
  %v370 = vunpack.c.l.b16 %v50
  %v371 = vunpack.c.l.b16 %v51
  %v372 = vunpack.c.l.b16 %v52
  %v373 = vunpack.c.l.b16 %v53
  %v374 = vunpack.c.l.b16 %v54
  %v375 = vunpack.c.l.b16 %v55
  %v376 = vunpack.c.l.b16 %v56
  %v377 = vunpack.c.l.b16 %v57
  %v378 = vunpack.c.l.b16 %v58
  %v379 = vunpack.c.l.b16 %v59
  %v380 = vunpack.c.l.b16 %v60
  %v381 = vunpack.c.l.b16 %v61
  %v382 = vunpack.c.l.b16 %v62
  %v383 = vunpack.c.l.b16 %v63
  %v384 = vunpack.c.l.b16 %v64
  %v385 = vunpack.c.l.b16 %v65
  %v386 = vunpack.c.l.b16 %v66
  %v387 = vunpack.c.l.b16 %v67
  %v388 = vunpack.c.l.b16 %v68
  %v389 = vunpack.c.l.b16 %v69
  %v390 = vunpack.c.l.b16 %v70
  %v391 = vunpack.c.l.b16 %v71
  %v392 = vunpack.c.l.b16 %v72
  %v393 = vunpack.c.l.b16 %v73
  %v394 = vunpack.c.l.b16 %v74
  %v395 = vunpack.c.l.b16 %v75
  %v396 = vunpack.c.l.b16 %v76
  %v397 = vunpack.c.l.b16 %v77
  %v398 = vunpack.c.l.b16 %v78
  %v399 = vunpack.c.l.b16 %v79
  %v400 = vunpack.c.l.b16 %v80
  %v401 = vunpack.c.l.b16 %v81
  %v402 = vunpack.c.l.b16 %v82
  %v403 = vunpack.c.l.b16 %v83
  %v404 = vunpack.c.l.b16 %v84
  %v405 = vunpack.c.l.b16 %v85
  %v406 = vunpack.c.l.b16 %v86
  %v407 = vunpack.c.l.b16 %v87
  %v408 = vunpack.c.l.b16 %v88
  %v409 = vunpack.c.l.b16 %v89
  %v410 = vunpack.c.l.b16 %v90
  %v411 = vunpack.c.l.b16 %v91
  %v412 = vunpack.c.l.b16 %v92
  %v413 = vunpack.c.l.b16 %v93
  %v414 = vunpack.c.l.b16 %v94
  %v415 = vpack.c.b16 %v368, %v367
  %v416 = vpack.c.b16 %v370, %v369
  %v417 = vpack.c.b16 %v372, %v371
  %v418 = vpack.c.b16 %v374, %v373
  %v419 = vpack.c.b16 %v376, %v375
  %v420 = vpack.c.b16 %v378, %v377
  %v421 = vpack.c.b16 %v380, %v379
  %v422 = vpack.c.b16 %v382, %v381
  %v423 = vpack.c.b16 %v384, %v383
  %v424 = vpack.c.b16 %v386, %v385
  %v425 = vpack.c.b16 %v388, %v387
  %v426 = vpack.c.b16 %v390, %v389
  %v427 = vpack.c.b16 %v392, %v391
  %v428 = vpack.c.b16 %v394, %v393
  %v429 = vpack.c.b16 %v396, %v395
  %v430 = vpack.c.b16 %v398, %v397
  %v431 = vpack.c.b16 %v400, %v399
  %v432 = vpack.c.b16 %v402, %v401
  %v433 = vpack.c.b16 %v404, %v403
  %v434 = vpack.c.b16 %v406, %v405
  %v435 = vpack.c.b16 %v408, %v407
  %v436 = vpack.c.b16 %v410, %v409
  %v437 = vpack.c.b16 %v412, %v411
  %v438 = vpack.c.b16 %v414, %v413
  %463 = vmatprep.subr.bf16.mxu0 0
  %464 = vmatpush1.bf16.msra.mxu0 %v415
  %465 = vmatprep.subr.bf16.mxu0 0
  %466 = vmatpush1.bf16.msra.mxu0 %v416
  %467 = vmatprep.subr.bf16.mxu0 0
  %468 = vmatpush1.bf16.msra.mxu0 %v417
  %469 = vmatprep.subr.bf16.mxu0 0
  %470 = vmatpush1.bf16.msra.mxu0 %v418
  %471 = vmatprep.subr.bf16.mxu0 0
  %472 = vmatpush1.bf16.msra.mxu0 %v419
  %473 = vmatprep.subr.bf16.mxu0 0
  %474 = vmatpush1.bf16.msra.mxu0 %v420
  %475 = vmatprep.subr.bf16.mxu0 0
  %476 = vmatpush1.bf16.msra.mxu0 %v421
  %477 = vmatprep.subr.bf16.mxu0 0
  %478 = vmatpush1.bf16.msra.mxu0 %v422
  %479 = vmatprep.subr.bf16.mxu0 0
  %480 = vmatpush1.bf16.msra.mxu0 %v423
  %481 = vmatprep.subr.bf16.mxu0 0
  %482 = vmatpush1.bf16.msra.mxu0 %v424
  %483 = vmatprep.subr.bf16.mxu0 0
  %484 = vmatpush1.bf16.msra.mxu0 %v425
  %485 = vmatprep.subr.bf16.mxu0 0
  %486 = vmatpush1.bf16.msra.mxu0 %v426
  %487 = vmatprep.subr.bf16.mxu0 0
  %488 = vmatpush1.bf16.msra.mxu0 %v427
  %489 = vmatprep.subr.bf16.mxu0 0
  %490 = vmatpush1.bf16.msra.mxu0 %v428
  %491 = vmatprep.subr.bf16.mxu0 0
  %492 = vmatpush1.bf16.msra.mxu0 %v429
  %493 = vmatprep.subr.bf16.mxu0 0
  %494 = vmatpush1.bf16.msra.mxu0 %v430
  %495 = vmatprep.mubr.bf16.mxu0 %v272
  %496 = vmatmul.mubr.bf16.gmra.mrb[0].mxu0 %v271
  %v497 = vpop.f32.mrb[0].mxu0
  %v498 = vadd.f32 %v114, %v497
  %v499 = vpop.f32.mrb[0].mxu0
  %v500 = vpop.f32.mrb[0].mxu0
  %v501 = vadd.f32 %v119, %v500
  %v502 = vpop.f32.mrb[0].mxu0
  %503 = vmatprep.mubr.bf16.mxu0 %v275
  %504 = vmatmul.mubr.bf16.gmra.mrb[0].mxu0 %v274
  %v505 = vpop.f32.mrb[0].mxu0
  %v506 = vadd.f32 %v124, %v505
  %v507 = vpop.f32.mrb[0].mxu0
  %v508 = vpop.f32.mrb[0].mxu0
  %v509 = vadd.f32 %v129, %v508
  %v510 = vpop.f32.mrb[0].mxu0
  %511 = vmatprep.mubr.bf16.mxu0 %v278
  %512 = vmatmul.mubr.bf16.gmra.mrb[0].mxu0 %v277
  %v513 = vpop.f32.mrb[0].mxu0
  %v514 = vadd.f32 %v134, %v513
  %v515 = vpop.f32.mrb[0].mxu0
  %v516 = vpop.f32.mrb[0].mxu0
  %v517 = vadd.f32 %v139, %v516
  %v518 = vpop.f32.mrb[0].mxu0
  %519 = vmatprep.mubr.bf16.mxu0 %v281
  %520 = vmatmul.mubr.bf16.gmra.mrb[0].mxu0 %v280
  %v521 = vpop.f32.mrb[0].mxu0
  %v522 = vadd.f32 %v144, %v521
  %v523 = vpop.f32.mrb[0].mxu0
  %v524 = vpop.f32.mrb[0].mxu0
  %v525 = vadd.f32 %v149, %v524
  %v526 = vpop.f32.mrb[0].mxu0
  %527 = vmatprep.mubr.bf16.mxu0 %v284
  %528 = vmatmul.mubr.bf16.gmra.mrb[0].mxu0 %v283
  %v529 = vpop.f32.mrb[0].mxu0
  %v530 = vadd.f32 %v154, %v529
  %v531 = vpop.f32.mrb[0].mxu0
  %v532 = vpop.f32.mrb[0].mxu0
  %v533 = vadd.f32 %v159, %v532
  %v534 = vpop.f32.mrb[0].mxu0
  %535 = vmatprep.mubr.bf16.mxu0 %v287
  %536 = vmatmul.mubr.bf16.gmra.mrb[0].mxu0 %v286
  %v537 = vpop.f32.mrb[0].mxu0
  %v538 = vadd.f32 %v164, %v537
  %v539 = vpop.f32.mrb[0].mxu0
  %v540 = vpop.f32.mrb[0].mxu0
  %v541 = vadd.f32 %v169, %v540
  %v542 = vpop.f32.mrb[0].mxu0
  %543 = vmatprep.mubr.bf16.mxu0 %v290
  %544 = vmatmul.mubr.bf16.gmra.mrb[0].mxu0 %v289
  %v545 = vpop.f32.mrb[0].mxu0
  %v546 = vadd.f32 %v174, %v545
  %v547 = vpop.f32.mrb[0].mxu0
  %v548 = vpop.f32.mrb[0].mxu0
  %v549 = vadd.f32 %v179, %v548
  %v550 = vpop.f32.mrb[0].mxu0
  %551 = vmatprep.mubr.bf16.mxu0 %v293
  %552 = vmatmul.mubr.bf16.gmra.mrb[0].mxu0 %v292
  %v553 = vpop.f32.mrb[0].mxu0
  %v554 = vadd.f32 %v184, %v553
  %v555 = vpop.f32.mrb[0].mxu0
  %v556 = vpop.f32.mrb[0].mxu0
  %v557 = vadd.f32 %v189, %v556
  %v558 = vpop.f32.mrb[0].mxu0
  %559 = vdwg.mxu0
  %560 = vmatprep.subr.bf16.mxu0 0
  %561 = vmatpush1.bf16.msra.mxu0 %v431
  %562 = vmatprep.subr.bf16.mxu0 0
  %563 = vmatpush1.bf16.msra.mxu0 %v432
  %564 = vmatprep.subr.bf16.mxu0 0
  %565 = vmatpush1.bf16.msra.mxu0 %v433
  %566 = vmatprep.subr.bf16.mxu0 0
  %567 = vmatpush1.bf16.msra.mxu0 %v434
  %568 = vmatprep.subr.bf16.mxu0 0
  %569 = vmatpush1.bf16.msra.mxu0 %v435
  %570 = vmatprep.subr.bf16.mxu0 0
  %571 = vmatpush1.bf16.msra.mxu0 %v436
  %572 = vmatprep.subr.bf16.mxu0 0
  %573 = vmatpush1.bf16.msra.mxu0 %v437
  %574 = vmatprep.subr.bf16.mxu0 0
  %575 = vmatpush1.bf16.msra.mxu0 %v438
  %576 = vmatprep.subr.bf16.mxu0 0
  %577 = vmatpush1.bf16.msra.mxu0 0
  %578 = vmatprep.subr.bf16.mxu0 0
  %579 = vmatpush1.bf16.msra.mxu0 0
  %580 = vmatprep.subr.bf16.mxu0 0
  %581 = vmatpush1.bf16.msra.mxu0 0
  %582 = vmatprep.subr.bf16.mxu0 0
  %583 = vmatpush1.bf16.msra.mxu0 0
  %584 = vmatprep.subr.bf16.mxu0 0
  %585 = vmatpush1.bf16.msra.mxu0 0
  %586 = vmatprep.subr.bf16.mxu0 0
  %587 = vmatpush1.bf16.msra.mxu0 0
  %588 = vmatprep.subr.bf16.mxu0 0
  %589 = vmatpush1.bf16.msra.mxu0 0
  %590 = vmatprep.subr.bf16.mxu0 0
  %591 = vmatpush1.bf16.msra.mxu0 0
  %592 = vmatprep.mubr.bf16.mxu0 0
  %593 = vmatmul.mubr.bf16.gmra.mrb[0].mxu0 %v273
  %v594 = vpop.f32.mrb[0].mxu0
  %v595 = vadd.f32 %v498, %v594
  %v596 = vpop.f32.mrb[0].mxu0
  %v597 = vpop.f32.mrb[0].mxu0
  %v598 = vadd.f32 %v501, %v597
  %v599 = vpop.f32.mrb[0].mxu0
  %600 = vmatprep.mubr.bf16.mxu0 0
  %601 = vmatmul.mubr.bf16.gmra.mrb[0].mxu0 %v276
  %v602 = vpop.f32.mrb[0].mxu0
  %v603 = vadd.f32 %v506, %v602
  %v604 = vpop.f32.mrb[0].mxu0
  %v605 = vpop.f32.mrb[0].mxu0
  %v606 = vadd.f32 %v509, %v605
  %v607 = vpop.f32.mrb[0].mxu0
  %608 = vmatprep.mubr.bf16.mxu0 0
  %609 = vmatmul.mubr.bf16.gmra.mrb[0].mxu0 %v279
  %v610 = vpop.f32.mrb[0].mxu0
  %v611 = vadd.f32 %v514, %v610
  %v612 = vpop.f32.mrb[0].mxu0
  %v613 = vpop.f32.mrb[0].mxu0
  %v614 = vadd.f32 %v517, %v613
  %v615 = vpop.f32.mrb[0].mxu0
  %616 = vmatprep.mubr.bf16.mxu0 0
  %617 = vmatmul.mubr.bf16.gmra.mrb[0].mxu0 %v282
  %v618 = vpop.f32.mrb[0].mxu0
  %v619 = vadd.f32 %v522, %v618
  %v620 = vpop.f32.mrb[0].mxu0
  %v621 = vpop.f32.mrb[0].mxu0
  %v622 = vadd.f32 %v525, %v621
  %v623 = vpop.f32.mrb[0].mxu0
  %624 = vmatprep.mubr.bf16.mxu0 0
  %625 = vmatmul.mubr.bf16.gmra.mrb[0].mxu0 %v285
  %v626 = vpop.f32.mrb[0].mxu0
  %v627 = vadd.f32 %v530, %v626
  %v628 = vpop.f32.mrb[0].mxu0
  %v629 = vpop.f32.mrb[0].mxu0
  %v630 = vadd.f32 %v533, %v629
  %v631 = vpop.f32.mrb[0].mxu0
  %632 = vmatprep.mubr.bf16.mxu0 0
  %633 = vmatmul.mubr.bf16.gmra.mrb[0].mxu0 %v288
  %v634 = vpop.f32.mrb[0].mxu0
  %v635 = vadd.f32 %v538, %v634
  %v636 = vpop.f32.mrb[0].mxu0
  %v637 = vpop.f32.mrb[0].mxu0
  %v638 = vadd.f32 %v541, %v637
  %v639 = vpop.f32.mrb[0].mxu0
  %640 = vmatprep.mubr.bf16.mxu0 0
  %641 = vmatmul.mubr.bf16.gmra.mrb[0].mxu0 %v291
  %v642 = vpop.f32.mrb[0].mxu0
  %v643 = vadd.f32 %v546, %v642
  %v644 = vpop.f32.mrb[0].mxu0
  %v645 = vpop.f32.mrb[0].mxu0
  %v646 = vadd.f32 %v549, %v645
  %v647 = vpop.f32.mrb[0].mxu0
  %648 = vmatprep.mubr.bf16.mxu0 0
  %649 = vmatmul.mubr.bf16.gmra.mrb[0].mxu0 %v294
  %v650 = vpop.f32.mrb[0].mxu0
  %v651 = vadd.f32 %v554, %v650
  %v652 = vpop.f32.mrb[0].mxu0
  %v653 = vpop.f32.mrb[0].mxu0
  %v654 = vadd.f32 %v557, %v653
  %v655 = vpop.f32.mrb[0].mxu0
  %656 = vdwg.mxu0
  %vm657 = vcmp.ge.f32.partialorder %v595, 0.0
  %vm658 = vcmp.ge.f32.partialorder %v598, 0.0
  %vm659 = vcmp.ge.f32.partialorder %v603, 0.0
  %vm660 = vcmp.ge.f32.partialorder %v606, 0.0
  %vm661 = vcmp.ge.f32.partialorder %v611, 0.0
  %vm662 = vcmp.ge.f32.partialorder %v614, 0.0
  %vm663 = vcmp.ge.f32.partialorder %v619, 0.0
  %vm664 = vcmp.ge.f32.partialorder %v622, 0.0
  %vm665 = vcmp.ge.f32.partialorder %v627, 0.0
  %vm666 = vcmp.ge.f32.partialorder %v630, 0.0
  %vm667 = vcmp.ge.f32.partialorder %v635, 0.0
  %vm668 = vcmp.ge.f32.partialorder %v638, 0.0
  %vm669 = vcmp.ge.f32.partialorder %v643, 0.0
  %vm670 = vcmp.ge.f32.partialorder %v646, 0.0
  %vm671 = vcmp.ge.f32.partialorder %v651, 0.0
  %vm672 = vcmp.ge.f32.partialorder %v654, 0.0
  %v673 = vmul.f32 %v595, 0.1
  %v674 = vmul.f32 %v598, 0.1
  %v675 = vmul.f32 %v603, 0.1
  %v676 = vmul.f32 %v606, 0.1
  %v677 = vmul.f32 %v611, 0.1
  %v678 = vmul.f32 %v614, 0.1
  %v679 = vmul.f32 %v619, 0.1
  %v680 = vmul.f32 %v622, 0.1
  %v681 = vmul.f32 %v627, 0.1
  %v682 = vmul.f32 %v630, 0.1
  %v683 = vmul.f32 %v635, 0.1
  %v684 = vmul.f32 %v638, 0.1
  %v685 = vmul.f32 %v643, 0.1
  %v686 = vmul.f32 %v646, 0.1
  %v687 = vmul.f32 %v651, 0.1
  %v688 = vmul.f32 %v654, 0.1
  %v689 = vsel %vm657, %v595, %v673
  %v690 = vsel %vm658, %v598, %v674
  %v691 = vsel %vm659, %v603, %v675
  %v692 = vsel %vm660, %v606, %v676
  %v693 = vsel %vm661, %v611, %v677
  %v694 = vsel %vm662, %v614, %v678
  %v695 = vsel %vm663, %v619, %v679
  %v696 = vsel %vm664, %v622, %v680
  %v697 = vsel %vm665, %v627, %v681
  %v698 = vsel %vm666, %v630, %v682
  %v699 = vsel %vm667, %v635, %v683
  %v700 = vsel %vm668, %v638, %v684
  %v701 = vsel %vm669, %v643, %v685
  %v702 = vsel %vm670, %v646, %v686
  %v703 = vsel %vm671, %v651, %v687
  %v704 = vsel %vm672, %v654, %v688
  %v705 = vpack.c.bf16 %v690, %v689
  %v706 = vpack.c.bf16 %v692, %v691
  %v707 = vpack.c.bf16 %v694, %v693
  %v708 = vpack.c.bf16 %v696, %v695
  %v709 = vpack.c.bf16 %v698, %v697
  %v710 = vpack.c.bf16 %v700, %v699
  %v711 = vpack.c.bf16 %v702, %v701
  %v712 = vpack.c.bf16 %v704, %v703
  %v721 = vunpack.c.l.b16 %v705
  %v722 = vunpack.c.h.b16 %v705
  %v723 = vunpack.c.l.b16 %v706
  %v724 = vunpack.c.h.b16 %v706
  %v725 = vunpack.c.l.b16 %v707
  %v726 = vunpack.c.h.b16 %v707
  %v727 = vunpack.c.l.b16 %v708
  %v728 = vunpack.c.h.b16 %v708
  %v729 = vunpack.c.l.b16 %v709
  %v730 = vunpack.c.h.b16 %v709
  %v731 = vunpack.c.l.b16 %v710
  %v732 = vunpack.c.h.b16 %v710
  %v733 = vunpack.c.l.b16 %v711
  %v734 = vunpack.c.h.b16 %v711
  %v735 = vunpack.c.l.b16 %v712
  %v736 = vunpack.c.h.b16 %v712
  %v737 = vpack.c.b16 %v721, %v721
  %v738 = vpack.c.b16 %v722, %v722
  %v739 = vpack.c.b16 %v723, %v723
  %v740 = vpack.c.b16 %v724, %v724
  %v741 = vpack.c.b16 %v725, %v725
  %v742 = vpack.c.b16 %v726, %v726
  %v743 = vpack.c.b16 %v727, %v727
  %v744 = vpack.c.b16 %v728, %v728
  %v745 = vpack.c.b16 %v729, %v729
  %v746 = vpack.c.b16 %v730, %v730
  %v747 = vpack.c.b16 %v731, %v731
  %v748 = vpack.c.b16 %v732, %v732
  %v749 = vpack.c.b16 %v733, %v733
  %v750 = vpack.c.b16 %v734, %v734
  %v751 = vpack.c.b16 %v735, %v735
  %v752 = vpack.c.b16 %v736, %v736
  %769 = vst [vmem:[%s3] sm:$0xf] %v737
  %770 = vst [vmem:[%s3 + $0x4] sm:$0xf] %v738
  %771 = vst [vmem:[%s3 + $0x8] sm:$0xf] %v739
  %772 = vst [vmem:[%s3 + $0xc] sm:$0xf] %v740
  %773 = vst [vmem:[%s3 + $0x10] sm:$0xf] %v741
  %774 = vst [vmem:[%s3 + $0x14] sm:$0xf] %v742
  %775 = vst [vmem:[%s3 + $0x18] sm:$0xf] %v743
  %776 = vst [vmem:[%s3 + $0x1c] sm:$0xf] %v744
  %777 = vst [vmem:[%s3 + $0x20] sm:$0xf] %v745
  %778 = vst [vmem:[%s3 + $0x24] sm:$0xf] %v746
  %779 = vst [vmem:[%s3 + $0x28] sm:$0xf] %v747
  %780 = vst [vmem:[%s3 + $0x2c] sm:$0xf] %v748
  %781 = vst [vmem:[%s3 + $0x30] sm:$0xf] %v749
  %782 = vst [vmem:[%s3 + $0x34] sm:$0xf] %v750
  %783 = vst [vmem:[%s3 + $0x38] sm:$0xf] %v751
  %784 = vst [vmem:[%s3 + $0x3c] sm:$0xf] %v752
  // Predicated region
  $region14: #{fwd.27} parent=0 // pred_check
    _
  $region15: #{fwd.27} parent=0 // pred_check_branch
    %786 = sbr.rel (0) target = $region17
  $region16: #{fwd.27} parent=0 // pred_region
    _
  $region17: #{fwd.27} parent=0 // pred_fallthru
    _
  // Predicated region
  $region18: #{fwd.27} parent=0 // pred_check
    _
  $region19: #{fwd.27} parent=0 // pred_check_branch
    %788 = sbr.rel (0) target = $region21
  $region20: #{fwd.27} parent=0 // pred_region
    _
  $region21: #{fwd.27} parent=0 // pred_fallthru
    _

// kernel: fwd.28
$region0: #{fwd.28}
  #allocation0 [shape = 'u32[]', space=smem, size = 0x4, offset = 0x4, fixed_abs, tag = 'smem constant byte address 0x4 - core index']
  #allocation1 [shape = 'u32[144,128]{1,0:T(1,128)}', space=vmem, size = 0x12000, scoped, tag = 'internal scratch']
  %s0 = inlined_call_operand.vmem [shape: bf16[128,640], index: 0, kind: input, shape index: {}]
  %s1 = inlined_call_operand.vmem [shape: bf16[640,128], index: 1, kind: input, shape index: {}]
  %s2 = inlined_call_operand.vmem [shape: f32[128,1], index: 2, kind: input, shape index: {}]
  %s3 = inlined_call_operand.vmem [shape: bf16[128,128], index: 3, kind: output, shape index: {}]
  %s4 = sld [smem:[#allocation0]]
  $region22: #{fwd.28} parent=0
    _
  %s6 = ssub.s32 1, %s4
  %s7 = scalar_select 0, %s6, %s4
  // Predicated region
  $region2: #{fwd.28} parent=0 // pred_check
    _
  $region3: #{fwd.28} parent=0 // pred_check_branch
    %9 = sbr.rel (0) target = $region5
  $region4: #{fwd.28} parent=0 // pred_region
    _
  $region5: #{fwd.28} parent=0 // pred_fallthru
    _
  // Predicated region
  $region6: #{fwd.28} parent=0 // pred_check
    _
  $region7: #{fwd.28} parent=0 // pred_check_branch
    %11 = sbr.rel (0) target = $region9
  $region8: #{fwd.28} parent=0 // pred_region
    _
  $region9: #{fwd.28} parent=0 // pred_fallthru
    _
  // Predicated region
  $region10: #{fwd.28} parent=0 // pred_check
    _
  $region11: #{fwd.28} parent=0 // pred_check_branch
    %13 = sbr.rel (0) target = $region13
  $region12: #{fwd.28} parent=0 // pred_region
    _
  $region13: #{fwd.28} parent=0 // pred_fallthru
    _
  %v15 = vld [vmem:[%s0] sm:$0xff]
  %v16 = vld [vmem:[%s0 + $0x8] sm:$0xff]
  %v17 = vld [vmem:[%s0 + $0x10] sm:$0xf]
  %v18 = vld [vmem:[%s0 + $0x14] sm:$0xff]
  %v19 = vld [vmem:[%s0 + $0x1c] sm:$0xff]
  %v20 = vld [vmem:[%s0 + $0x24] sm:$0xf]
  %v21 = vld [vmem:[%s0 + $0x28] sm:$0xff]
  %v22 = vld [vmem:[%s0 + $0x30] sm:$0xff]
  %v23 = vld [vmem:[%s0 + $0x38] sm:$0xf]
  %v24 = vld [vmem:[%s0 + $0x3c] sm:$0xff]
  %v25 = vld [vmem:[%s0 + $0x44] sm:$0xff]
  %v26 = vld [vmem:[%s0 + $0x4c] sm:$0xf]
  %v27 = vld [vmem:[%s0 + $0x50] sm:$0xff]
  %v28 = vld [vmem:[%s0 + $0x58] sm:$0xff]
  %v29 = vld [vmem:[%s0 + $0x60] sm:$0xf]
  %v30 = vld [vmem:[%s0 + $0x64] sm:$0xff]
  %v31 = vld [vmem:[%s0 + $0x6c] sm:$0xff]
  %v32 = vld [vmem:[%s0 + $0x74] sm:$0xf]
  %v33 = vld [vmem:[%s0 + $0x78] sm:$0xff]
  %v34 = vld [vmem:[%s0 + $0x80] sm:$0xff]
  %v35 = vld [vmem:[%s0 + $0x88] sm:$0xf]
  %v36 = vld [vmem:[%s0 + $0x8c] sm:$0xff]
  %v37 = vld [vmem:[%s0 + $0x94] sm:$0xff]
  %v38 = vld [vmem:[%s0 + $0x9c] sm:$0xf]
  %v39 = vld [vmem:[%s0 + $0xa0] sm:$0xff]
  %v40 = vld [vmem:[%s0 + $0xa8] sm:$0xff]
  %v41 = vld [vmem:[%s0 + $0xb0] sm:$0xf]
  %v42 = vld [vmem:[%s0 + $0xb4] sm:$0xff]
  %v43 = vld [vmem:[%s0 + $0xbc] sm:$0xff]
  %v44 = vld [vmem:[%s0 + $0xc4] sm:$0xf]
  %v45 = vld [vmem:[%s0 + $0xc8] sm:$0xff]
  %v46 = vld [vmem:[%s0 + $0xd0] sm:$0xff]
  %v47 = vld [vmem:[%s0 + $0xd8] sm:$0xf]
  %v48 = vld [vmem:[%s0 + $0xdc] sm:$0xff]
  %v49 = vld [vmem:[%s0 + $0xe4] sm:$0xff]
  %v50 = vld [vmem:[%s0 + $0xec] sm:$0xf]
  %v51 = vld [vmem:[%s0 + $0xf0] sm:$0xff]
  %v52 = vld [vmem:[%s0 + $0xf8] sm:$0xff]
  %v53 = vld [vmem:[%s0 + $0x100] sm:$0xf]
  %v54 = vld [vmem:[%s0 + $0x104] sm:$0xff]
  %v55 = vld [vmem:[%s0 + $0x10c] sm:$0xff]
  %v56 = vld [vmem:[%s0 + $0x114] sm:$0xf]
  %v57 = vld [vmem:[%s0 + $0x118] sm:$0xff]
  %v58 = vld [vmem:[%s0 + $0x120] sm:$0xff]
  %v59 = vld [vmem:[%s0 + $0x128] sm:$0xf]
  %v60 = vld [vmem:[%s0 + $0x12c] sm:$0xff]
  %v61 = vld [vmem:[%s0 + $0x134] sm:$0xff]
  %v62 = vld [vmem:[%s0 + $0x13c] sm:$0xf]
  %v63 = vld [vmem:[%s1] sm:$0xf]
  %v64 = vld [vmem:[%s1 + $0x4] sm:$0xf]
  %v65 = vld [vmem:[%s1 + $0x8] sm:$0xf]
  %v66 = vld [vmem:[%s1 + $0xc] sm:$0xf]
  %v67 = vld [vmem:[%s1 + $0x10] sm:$0xf]
  %v68 = vld [vmem:[%s1 + $0x14] sm:$0xf]
  %v69 = vld [vmem:[%s1 + $0x18] sm:$0xf]
  %v70 = vld [vmem:[%s1 + $0x1c] sm:$0xf]
  %v71 = vld [vmem:[%s1 + $0x20] sm:$0xf]
  %v72 = vld [vmem:[%s1 + $0x24] sm:$0xf]
  %v73 = vld [vmem:[%s1 + $0x28] sm:$0xf]
  %v74 = vld [vmem:[%s1 + $0x2c] sm:$0xf]
  %v75 = vld [vmem:[%s1 + $0x30] sm:$0xf]
  %v76 = vld [vmem:[%s1 + $0x34] sm:$0xf]
  %v77 = vld [vmem:[%s1 + $0x38] sm:$0xf]
  %v78 = vld [vmem:[%s1 + $0x3c] sm:$0xf]
  %v79 = vld [vmem:[%s1 + $0x40] sm:$0xf]
  %v80 = vld [vmem:[%s1 + $0x44] sm:$0xf]
  %v81 = vld [vmem:[%s1 + $0x48] sm:$0xf]
  %v82 = vld [vmem:[%s1 + $0x4c] sm:$0xf]
  %v83 = vld [vmem:[%s1 + $0x50] sm:$0xf]
  %v84 = vld [vmem:[%s1 + $0x54] sm:$0xf]
  %v85 = vld [vmem:[%s1 + $0x58] sm:$0xf]
  %v86 = vld [vmem:[%s1 + $0x5c] sm:$0xf]
  %v87 = vld [vmem:[%s1 + $0x60] sm:$0xf]
  %v88 = vld [vmem:[%s1 + $0x64] sm:$0xf]
  %v89 = vld [vmem:[%s1 + $0x68] sm:$0xf]
  %v90 = vld [vmem:[%s1 + $0x6c] sm:$0xf]
  %v91 = vld [vmem:[%s1 + $0x70] sm:$0xf]
  %v92 = vld [vmem:[%s1 + $0x74] sm:$0xf]
  %v93 = vld [vmem:[%s1 + $0x78] sm:$0xf]
  %v94 = vld [vmem:[%s1 + $0x7c] sm:$0xf]
  %v95 = vld [vmem:[%s1 + $0x80] sm:$0xf]
  %v96 = vld [vmem:[%s1 + $0x84] sm:$0xf]
  %v97 = vld [vmem:[%s1 + $0x88] sm:$0xf]
  %v98 = vld [vmem:[%s1 + $0x8c] sm:$0xf]
  %v99 = vld [vmem:[%s1 + $0x90] sm:$0xf]
  %v100 = vld [vmem:[%s1 + $0x94] sm:$0xf]
  %v101 = vld [vmem:[%s1 + $0x98] sm:$0xf]
  %v102 = vld [vmem:[%s1 + $0x9c] sm:$0xf]
  %v103 = vld [vmem:[%s1 + $0xa0] sm:$0xf]
  %v104 = vld [vmem:[%s1 + $0xa4] sm:$0xf]
  %v105 = vld [vmem:[%s1 + $0xa8] sm:$0xf]
  %v106 = vld [vmem:[%s1 + $0xac] sm:$0xf]
  %v107 = vld [vmem:[%s1 + $0xb0] sm:$0xf]
  %v108 = vld [vmem:[%s1 + $0xb4] sm:$0xf]
  %v109 = vld [vmem:[%s1 + $0xb8] sm:$0xf]
  %v110 = vld [vmem:[%s1 + $0xbc] sm:$0xf]
  %v111 = vld [vmem:[%s1 + $0xc0] sm:$0xf]
  %v112 = vld [vmem:[%s1 + $0xc4] sm:$0xf]
  %v113 = vld [vmem:[%s1 + $0xc8] sm:$0xf]
  %v114 = vld [vmem:[%s1 + $0xcc] sm:$0xf]
  %v115 = vld [vmem:[%s1 + $0xd0] sm:$0xf]
  %v116 = vld [vmem:[%s1 + $0xd4] sm:$0xf]
  %v117 = vld [vmem:[%s1 + $0xd8] sm:$0xf]
  %v118 = vld [vmem:[%s1 + $0xdc] sm:$0xf]
  %v119 = vld [vmem:[%s1 + $0xe0] sm:$0xf]
  %v120 = vld [vmem:[%s1 + $0xe4] sm:$0xf]
  %v121 = vld [vmem:[%s1 + $0xe8] sm:$0xf]
  %v122 = vld [vmem:[%s1 + $0xec] sm:$0xf]
  %v123 = vld [vmem:[%s1 + $0xf0] sm:$0xf]
  %v124 = vld [vmem:[%s1 + $0xf4] sm:$0xf]
  %v125 = vld [vmem:[%s1 + $0xf8] sm:$0xf]
  %v126 = vld [vmem:[%s1 + $0xfc] sm:$0xf]
  %v127 = vld [vmem:[%s1 + $0x100] sm:$0xf]
  %v128 = vld [vmem:[%s1 + $0x104] sm:$0xf]
  %v129 = vld [vmem:[%s1 + $0x108] sm:$0xf]
  %v130 = vld [vmem:[%s1 + $0x10c] sm:$0xf]
  %v131 = vld [vmem:[%s1 + $0x110] sm:$0xf]
  %v132 = vld [vmem:[%s1 + $0x114] sm:$0xf]
  %v133 = vld [vmem:[%s1 + $0x118] sm:$0xf]
  %v134 = vld [vmem:[%s1 + $0x11c] sm:$0xf]
  %v135 = vld [vmem:[%s1 + $0x120] sm:$0xf]
  %v136 = vld [vmem:[%s1 + $0x124] sm:$0xf]
  %v137 = vld [vmem:[%s1 + $0x128] sm:$0xf]
  %v138 = vld [vmem:[%s1 + $0x12c] sm:$0xf]
  %v139 = vld [vmem:[%s1 + $0x130] sm:$0xf]
  %v140 = vld [vmem:[%s1 + $0x134] sm:$0xf]
  %v141 = vld [vmem:[%s1 + $0x138] sm:$0xf]
  %v142 = vld [vmem:[%s1 + $0x13c] sm:$0xf]
  %v143 = vld [vmem:[%s2] sm:$0xff]
  %v144 = vld [vmem:[%s2 + $0x8] sm:$0xff]
  %v145 = vld [vmem:[%s2 + $0x10] sm:$0xff]
  %v146 = vld [vmem:[%s2 + $0x18] sm:$0xff]
  %v147 = vld [vmem:[%s2 + $0x20] sm:$0xff]
  %v148 = vld [vmem:[%s2 + $0x28] sm:$0xff]
  %v149 = vld [vmem:[%s2 + $0x30] sm:$0xff]
  %v150 = vld [vmem:[%s2 + $0x38] sm:$0xff]
  %v151 = vld [vmem:[%s2 + $0x40] sm:$0xff]
  %v152 = vld [vmem:[%s2 + $0x48] sm:$0xff]
  %v153 = vld [vmem:[%s2 + $0x50] sm:$0xff]
  %v154 = vld [vmem:[%s2 + $0x58] sm:$0xff]
  %v155 = vld [vmem:[%s2 + $0x60] sm:$0xff]
  %v156 = vld [vmem:[%s2 + $0x68] sm:$0xff]
  %v157 = vld [vmem:[%s2 + $0x70] sm:$0xff]
  %v158 = vld [vmem:[%s2 + $0x78] sm:$0xff]
  %160 = vset.pattern.permute.xlu0 0
  %161 = vperm.xlu0 %160, %v143
  %v162 = vpop.permute.xlu0 %161
  %165 = vset.pattern.permute.xlu0 0
  %166 = vperm.xlu0 %165, %v144
  %v167 = vpop.permute.xlu0 %166
  %170 = vset.pattern.permute.xlu0 0
  %171 = vperm.xlu0 %170, %v145
  %v172 = vpop.permute.xlu0 %171
  %175 = vset.pattern.permute.xlu0 0
  %176 = vperm.xlu0 %175, %v146
  %v177 = vpop.permute.xlu0 %176
  %180 = vset.pattern.permute.xlu0 0
  %181 = vperm.xlu0 %180, %v147
  %v182 = vpop.permute.xlu0 %181
  %185 = vset.pattern.permute.xlu0 0
  %186 = vperm.xlu0 %185, %v148
  %v187 = vpop.permute.xlu0 %186
  %190 = vset.pattern.permute.xlu0 0
  %191 = vperm.xlu0 %190, %v149
  %v192 = vpop.permute.xlu0 %191
  %195 = vset.pattern.permute.xlu0 0
  %196 = vperm.xlu0 %195, %v150
  %v197 = vpop.permute.xlu0 %196
  %200 = vset.pattern.permute.xlu0 0
  %201 = vperm.xlu0 %200, %v151
  %v202 = vpop.permute.xlu0 %201
  %205 = vset.pattern.permute.xlu0 0
  %206 = vperm.xlu0 %205, %v152
  %v207 = vpop.permute.xlu0 %206
  %210 = vset.pattern.permute.xlu0 0
  %211 = vperm.xlu0 %210, %v153
  %v212 = vpop.permute.xlu0 %211
  %215 = vset.pattern.permute.xlu0 0
  %216 = vperm.xlu0 %215, %v154
  %v217 = vpop.permute.xlu0 %216
  %220 = vset.pattern.permute.xlu0 0
  %221 = vperm.xlu0 %220, %v155
  %v222 = vpop.permute.xlu0 %221
  %225 = vset.pattern.permute.xlu0 0
  %226 = vperm.xlu0 %225, %v156
  %v227 = vpop.permute.xlu0 %226
  %230 = vset.pattern.permute.xlu0 0
  %231 = vperm.xlu0 %230, %v157
  %v232 = vpop.permute.xlu0 %231
  %235 = vset.pattern.permute.xlu0 0
  %236 = vperm.xlu0 %235, %v158
  %v237 = vpop.permute.xlu0 %236
  %v287 = vunpack.c.l.b16 %v15
  %v288 = vunpack.c.h.b16 %v15
  %v289 = vunpack.c.l.b16 %v16
  %v290 = vunpack.c.h.b16 %v16
  %v291 = vunpack.c.l.b16 %v17
  %v292 = vunpack.c.l.b16 %v18
  %v293 = vunpack.c.h.b16 %v18
  %v294 = vunpack.c.l.b16 %v19
  %v295 = vunpack.c.h.b16 %v19
  %v296 = vunpack.c.l.b16 %v20
  %v297 = vunpack.c.l.b16 %v21
  %v298 = vunpack.c.h.b16 %v21
  %v299 = vunpack.c.l.b16 %v22
  %v300 = vunpack.c.h.b16 %v22
  %v301 = vunpack.c.l.b16 %v23
  %v302 = vunpack.c.l.b16 %v24
  %v303 = vunpack.c.h.b16 %v24
  %v304 = vunpack.c.l.b16 %v25
  %v305 = vunpack.c.h.b16 %v25
  %v306 = vunpack.c.l.b16 %v26
  %v307 = vunpack.c.l.b16 %v27
  %v308 = vunpack.c.h.b16 %v27
  %v309 = vunpack.c.l.b16 %v28
  %v310 = vunpack.c.h.b16 %v28
  %v311 = vunpack.c.l.b16 %v29
  %v312 = vunpack.c.l.b16 %v30
  %v313 = vunpack.c.h.b16 %v30
  %v314 = vunpack.c.l.b16 %v31
  %v315 = vunpack.c.h.b16 %v31
  %v316 = vunpack.c.l.b16 %v32
  %v317 = vunpack.c.l.b16 %v33
  %v318 = vunpack.c.h.b16 %v33
  %v319 = vunpack.c.l.b16 %v34
  %v320 = vunpack.c.h.b16 %v34
  %v321 = vunpack.c.l.b16 %v35
  %v322 = vunpack.c.l.b16 %v36
  %v323 = vunpack.c.h.b16 %v36
  %v324 = vunpack.c.l.b16 %v37
  %v325 = vunpack.c.h.b16 %v37
  %v326 = vunpack.c.l.b16 %v38
  %v327 = vunpack.c.l.b16 %v39
  %v328 = vunpack.c.h.b16 %v39
  %v329 = vunpack.c.l.b16 %v40
  %v330 = vunpack.c.h.b16 %v40
  %v331 = vunpack.c.l.b16 %v41
  %v332 = vunpack.c.l.b16 %v42
  %v333 = vunpack.c.h.b16 %v42
  %v334 = vunpack.c.l.b16 %v43
  %v335 = vunpack.c.h.b16 %v43
  %v336 = vunpack.c.l.b16 %v44
  %v337 = vunpack.c.l.b16 %v45
  %v338 = vunpack.c.h.b16 %v45
  %v339 = vunpack.c.l.b16 %v46
  %v340 = vunpack.c.h.b16 %v46
  %v341 = vunpack.c.l.b16 %v47
  %v342 = vunpack.c.l.b16 %v48
  %v343 = vunpack.c.h.b16 %v48
  %v344 = vunpack.c.l.b16 %v49
  %v345 = vunpack.c.h.b16 %v49
  %v346 = vunpack.c.l.b16 %v50
  %v347 = vunpack.c.l.b16 %v51
  %v348 = vunpack.c.h.b16 %v51
  %v349 = vunpack.c.l.b16 %v52
  %v350 = vunpack.c.h.b16 %v52
  %v351 = vunpack.c.l.b16 %v53
  %v352 = vunpack.c.l.b16 %v54
  %v353 = vunpack.c.h.b16 %v54
  %v354 = vunpack.c.l.b16 %v55
  %v355 = vunpack.c.h.b16 %v55
  %v356 = vunpack.c.l.b16 %v56
  %v357 = vunpack.c.l.b16 %v57
  %v358 = vunpack.c.h.b16 %v57
  %v359 = vunpack.c.l.b16 %v58
  %v360 = vunpack.c.h.b16 %v58
  %v361 = vunpack.c.l.b16 %v59
  %v362 = vunpack.c.l.b16 %v60
  %v363 = vunpack.c.h.b16 %v60
  %v364 = vunpack.c.l.b16 %v61
  %v365 = vunpack.c.h.b16 %v61
  %v366 = vunpack.c.l.b16 %v62
  %v367 = vpack.c.b16 %v292, %v287
  %v368 = vpack.c.b16 %v293, %v288
  %v369 = vpack.c.b16 %v294, %v289
  %v370 = vpack.c.b16 %v295, %v290
  %v371 = vpack.c.b16 %v296, %v291
  %v372 = vpack.c.b16 %v302, %v297
  %v373 = vpack.c.b16 %v303, %v298
  %v374 = vpack.c.b16 %v304, %v299
  %v375 = vpack.c.b16 %v305, %v300
  %v376 = vpack.c.b16 %v306, %v301
  %v377 = vpack.c.b16 %v312, %v307
  %v378 = vpack.c.b16 %v313, %v308
  %v379 = vpack.c.b16 %v314, %v309
  %v380 = vpack.c.b16 %v315, %v310
  %v381 = vpack.c.b16 %v316, %v311
  %v382 = vpack.c.b16 %v322, %v317
  %v383 = vpack.c.b16 %v323, %v318
  %v384 = vpack.c.b16 %v324, %v319
  %v385 = vpack.c.b16 %v325, %v320
  %v386 = vpack.c.b16 %v326, %v321
  %v387 = vpack.c.b16 %v332, %v327
  %v388 = vpack.c.b16 %v333, %v328
  %v389 = vpack.c.b16 %v334, %v329
  %v390 = vpack.c.b16 %v335, %v330
  %v391 = vpack.c.b16 %v336, %v331
  %v392 = vpack.c.b16 %v342, %v337
  %v393 = vpack.c.b16 %v343, %v338
  %v394 = vpack.c.b16 %v344, %v339
  %v395 = vpack.c.b16 %v345, %v340
  %v396 = vpack.c.b16 %v346, %v341
  %v397 = vpack.c.b16 %v352, %v347
  %v398 = vpack.c.b16 %v353, %v348
  %v399 = vpack.c.b16 %v354, %v349
  %v400 = vpack.c.b16 %v355, %v350
  %v401 = vpack.c.b16 %v356, %v351
  %v402 = vpack.c.b16 %v362, %v357
  %v403 = vpack.c.b16 %v363, %v358
  %v404 = vpack.c.b16 %v364, %v359
  %v405 = vpack.c.b16 %v365, %v360
  %v406 = vpack.c.b16 %v366, %v361
  %v527 = vunpack.c.l.b16 %v63
  %v528 = vunpack.c.l.b16 %v64
  %v529 = vunpack.c.l.b16 %v65
  %v530 = vunpack.c.l.b16 %v66
  %v531 = vunpack.c.l.b16 %v67
  %v532 = vunpack.c.l.b16 %v68
  %v533 = vunpack.c.l.b16 %v69
  %v534 = vunpack.c.l.b16 %v70
  %v535 = vunpack.c.l.b16 %v71
  %v536 = vunpack.c.l.b16 %v72
  %v537 = vunpack.c.l.b16 %v73
  %v538 = vunpack.c.l.b16 %v74
  %v539 = vunpack.c.l.b16 %v75
  %v540 = vunpack.c.l.b16 %v76
  %v541 = vunpack.c.l.b16 %v77
  %v542 = vunpack.c.l.b16 %v78
  %v543 = vunpack.c.l.b16 %v79
  %v544 = vunpack.c.l.b16 %v80
  %v545 = vunpack.c.l.b16 %v81
  %v546 = vunpack.c.l.b16 %v82
  %v547 = vunpack.c.l.b16 %v83
  %v548 = vunpack.c.l.b16 %v84
  %v549 = vunpack.c.l.b16 %v85
  %v550 = vunpack.c.l.b16 %v86
  %v551 = vunpack.c.l.b16 %v87
  %v552 = vunpack.c.l.b16 %v88
  %v553 = vunpack.c.l.b16 %v89
  %v554 = vunpack.c.l.b16 %v90
  %v555 = vunpack.c.l.b16 %v91
  %v556 = vunpack.c.l.b16 %v92
  %v557 = vunpack.c.l.b16 %v93
  %v558 = vunpack.c.l.b16 %v94
  %v559 = vunpack.c.l.b16 %v95
  %v560 = vunpack.c.l.b16 %v96
  %v561 = vunpack.c.l.b16 %v97
  %v562 = vunpack.c.l.b16 %v98
  %v563 = vunpack.c.l.b16 %v99
  %v564 = vunpack.c.l.b16 %v100
  %v565 = vunpack.c.l.b16 %v101
  %v566 = vunpack.c.l.b16 %v102
  %v567 = vunpack.c.l.b16 %v103
  %v568 = vunpack.c.l.b16 %v104
  %v569 = vunpack.c.l.b16 %v105
  %v570 = vunpack.c.l.b16 %v106
  %v571 = vunpack.c.l.b16 %v107
  %v572 = vunpack.c.l.b16 %v108
  %v573 = vunpack.c.l.b16 %v109
  %v574 = vunpack.c.l.b16 %v110
  %v575 = vunpack.c.l.b16 %v111
  %v576 = vunpack.c.l.b16 %v112
  %v577 = vunpack.c.l.b16 %v113
  %v578 = vunpack.c.l.b16 %v114
  %v579 = vunpack.c.l.b16 %v115
  %v580 = vunpack.c.l.b16 %v116
  %v581 = vunpack.c.l.b16 %v117
  %v582 = vunpack.c.l.b16 %v118
  %v583 = vunpack.c.l.b16 %v119
  %v584 = vunpack.c.l.b16 %v120
  %v585 = vunpack.c.l.b16 %v121
  %v586 = vunpack.c.l.b16 %v122
  %v587 = vunpack.c.l.b16 %v123
  %v588 = vunpack.c.l.b16 %v124
  %v589 = vunpack.c.l.b16 %v125
  %v590 = vunpack.c.l.b16 %v126
  %v591 = vunpack.c.l.b16 %v127
  %v592 = vunpack.c.l.b16 %v128
  %v593 = vunpack.c.l.b16 %v129
  %v594 = vunpack.c.l.b16 %v130
  %v595 = vunpack.c.l.b16 %v131
  %v596 = vunpack.c.l.b16 %v132
  %v597 = vunpack.c.l.b16 %v133
  %v598 = vunpack.c.l.b16 %v134
  %v599 = vunpack.c.l.b16 %v135
  %v600 = vunpack.c.l.b16 %v136
  %v601 = vunpack.c.l.b16 %v137
  %v602 = vunpack.c.l.b16 %v138
  %v603 = vunpack.c.l.b16 %v139
  %v604 = vunpack.c.l.b16 %v140
  %v605 = vunpack.c.l.b16 %v141
  %v606 = vunpack.c.l.b16 %v142
  %v607 = vpack.c.b16 %v528, %v527
  %v608 = vpack.c.b16 %v530, %v529
  %v609 = vpack.c.b16 %v532, %v531
  %v610 = vpack.c.b16 %v534, %v533
  %v611 = vpack.c.b16 %v536, %v535
  %v612 = vpack.c.b16 %v538, %v537
  %v613 = vpack.c.b16 %v540, %v539
  %v614 = vpack.c.b16 %v542, %v541
  %v615 = vpack.c.b16 %v544, %v543
  %v616 = vpack.c.b16 %v546, %v545
  %v617 = vpack.c.b16 %v548, %v547
  %v618 = vpack.c.b16 %v550, %v549
  %v619 = vpack.c.b16 %v552, %v551
  %v620 = vpack.c.b16 %v554, %v553
  %v621 = vpack.c.b16 %v556, %v555
  %v622 = vpack.c.b16 %v558, %v557
  %v623 = vpack.c.b16 %v560, %v559
  %v624 = vpack.c.b16 %v562, %v561
  %v625 = vpack.c.b16 %v564, %v563
  %v626 = vpack.c.b16 %v566, %v565
  %v627 = vpack.c.b16 %v568, %v567
  %v628 = vpack.c.b16 %v570, %v569
  %v629 = vpack.c.b16 %v572, %v571
  %v630 = vpack.c.b16 %v574, %v573
  %v631 = vpack.c.b16 %v576, %v575
  %v632 = vpack.c.b16 %v578, %v577
  %v633 = vpack.c.b16 %v580, %v579
  %v634 = vpack.c.b16 %v582, %v581
  %v635 = vpack.c.b16 %v584, %v583
  %v636 = vpack.c.b16 %v586, %v585
  %v637 = vpack.c.b16 %v588, %v587
  %v638 = vpack.c.b16 %v590, %v589
  %v639 = vpack.c.b16 %v592, %v591
  %v640 = vpack.c.b16 %v594, %v593
  %v641 = vpack.c.b16 %v596, %v595
  %v642 = vpack.c.b16 %v598, %v597
  %v643 = vpack.c.b16 %v600, %v599
  %v644 = vpack.c.b16 %v602, %v601
  %v645 = vpack.c.b16 %v604, %v603
  %v646 = vpack.c.b16 %v606, %v605
  %687 = vmatprep.subr.bf16.mxu0 0
  %688 = vmatpush1.bf16.msra.mxu0 %v607
  %689 = vmatprep.subr.bf16.mxu0 0
  %690 = vmatpush1.bf16.msra.mxu0 %v608
  %691 = vmatprep.subr.bf16.mxu0 0
  %692 = vmatpush1.bf16.msra.mxu0 %v609
  %693 = vmatprep.subr.bf16.mxu0 0
  %694 = vmatpush1.bf16.msra.mxu0 %v610
  %695 = vmatprep.subr.bf16.mxu0 0
  %696 = vmatpush1.bf16.msra.mxu0 %v611
  %697 = vmatprep.subr.bf16.mxu0 0
  %698 = vmatpush1.bf16.msra.mxu0 %v612
  %699 = vmatprep.subr.bf16.mxu0 0
  %700 = vmatpush1.bf16.msra.mxu0 %v613
  %701 = vmatprep.subr.bf16.mxu0 0
  %702 = vmatpush1.bf16.msra.mxu0 %v614
  %703 = vmatprep.subr.bf16.mxu0 0
  %704 = vmatpush1.bf16.msra.mxu0 %v615
  %705 = vmatprep.subr.bf16.mxu0 0
  %706 = vmatpush1.bf16.msra.mxu0 %v616
  %707 = vmatprep.subr.bf16.mxu0 0
  %708 = vmatpush1.bf16.msra.mxu0 %v617
  %709 = vmatprep.subr.bf16.mxu0 0
  %710 = vmatpush1.bf16.msra.mxu0 %v618
  %711 = vmatprep.subr.bf16.mxu0 0
  %712 = vmatpush1.bf16.msra.mxu0 %v619
  %713 = vmatprep.subr.bf16.mxu0 0
  %714 = vmatpush1.bf16.msra.mxu0 %v620
  %715 = vmatprep.subr.bf16.mxu0 0
  %716 = vmatpush1.bf16.msra.mxu0 %v621
  %717 = vmatprep.subr.bf16.mxu0 0
  %718 = vmatpush1.bf16.msra.mxu0 %v622
  %719 = vmatprep.mubr.bf16.mxu0 %v368
  %720 = vmatmul.mubr.bf16.gmra.mrb[0].mxu0 %v367
  %v721 = vpop.f32.mrb[0].mxu0
  %v722 = vadd.f32 %v162, %v721
  %v723 = vpop.f32.mrb[0].mxu0
  %v724 = vpop.f32.mrb[0].mxu0
  %v725 = vadd.f32 %v167, %v724
  %v726 = vpop.f32.mrb[0].mxu0
  %727 = vmatprep.mubr.bf16.mxu0 %v373
  %728 = vmatmul.mubr.bf16.gmra.mrb[0].mxu0 %v372
  %v729 = vpop.f32.mrb[0].mxu0
  %v730 = vadd.f32 %v172, %v729
  %v731 = vpop.f32.mrb[0].mxu0
  %v732 = vpop.f32.mrb[0].mxu0
  %v733 = vadd.f32 %v177, %v732
  %v734 = vpop.f32.mrb[0].mxu0
  %735 = vmatprep.mubr.bf16.mxu0 %v378
  %736 = vmatmul.mubr.bf16.gmra.mrb[0].mxu0 %v377
  %v737 = vpop.f32.mrb[0].mxu0
  %v738 = vadd.f32 %v182, %v737
  %v739 = vpop.f32.mrb[0].mxu0
  %v740 = vpop.f32.mrb[0].mxu0
  %v741 = vadd.f32 %v187, %v740
  %v742 = vpop.f32.mrb[0].mxu0
  %743 = vmatprep.mubr.bf16.mxu0 %v383
  %744 = vmatmul.mubr.bf16.gmra.mrb[0].mxu0 %v382
  %v745 = vpop.f32.mrb[0].mxu0
  %v746 = vadd.f32 %v192, %v745
  %v747 = vpop.f32.mrb[0].mxu0
  %v748 = vpop.f32.mrb[0].mxu0
  %v749 = vadd.f32 %v197, %v748
  %v750 = vpop.f32.mrb[0].mxu0
  %751 = vmatprep.mubr.bf16.mxu0 %v388
  %752 = vmatmul.mubr.bf16.gmra.mrb[0].mxu0 %v387
  %v753 = vpop.f32.mrb[0].mxu0
  %v754 = vadd.f32 %v202, %v753
  %v755 = vpop.f32.mrb[0].mxu0
  %v756 = vpop.f32.mrb[0].mxu0
  %v757 = vadd.f32 %v207, %v756
  %v758 = vpop.f32.mrb[0].mxu0
  %759 = vmatprep.mubr.bf16.mxu0 %v393
  %760 = vmatmul.mubr.bf16.gmra.mrb[0].mxu0 %v392
  %v761 = vpop.f32.mrb[0].mxu0
  %v762 = vadd.f32 %v212, %v761
  %v763 = vpop.f32.mrb[0].mxu0
  %v764 = vpop.f32.mrb[0].mxu0
  %v765 = vadd.f32 %v217, %v764
  %v766 = vpop.f32.mrb[0].mxu0
  %767 = vmatprep.mubr.bf16.mxu0 %v398
  %768 = vmatmul.mubr.bf16.gmra.mrb[0].mxu0 %v397
  %v769 = vpop.f32.mrb[0].mxu0
  %v770 = vadd.f32 %v222, %v769
  %v771 = vpop.f32.mrb[0].mxu0
  %v772 = vpop.f32.mrb[0].mxu0
  %v773 = vadd.f32 %v227, %v772
  %v774 = vpop.f32.mrb[0].mxu0
  %775 = vmatprep.mubr.bf16.mxu0 %v403
  %776 = vmatmul.mubr.bf16.gmra.mrb[0].mxu0 %v402
  %v777 = vpop.f32.mrb[0].mxu0
  %v778 = vadd.f32 %v232, %v777
  %v779 = vpop.f32.mrb[0].mxu0
  %v780 = vpop.f32.mrb[0].mxu0
  %v781 = vadd.f32 %v237, %v780
  %v782 = vpop.f32.mrb[0].mxu0
  %783 = vdwg.mxu0
  %784 = vmatprep.subr.bf16.mxu0 0
  %785 = vmatpush1.bf16.msra.mxu0 %v623
  %786 = vmatprep.subr.bf16.mxu0 0
  %787 = vmatpush1.bf16.msra.mxu0 %v624
  %788 = vmatprep.subr.bf16.mxu0 0
  %789 = vmatpush1.bf16.msra.mxu0 %v625
  %790 = vmatprep.subr.bf16.mxu0 0
  %791 = vmatpush1.bf16.msra.mxu0 %v626
  %792 = vmatprep.subr.bf16.mxu0 0
  %793 = vmatpush1.bf16.msra.mxu0 %v627
  %794 = vmatprep.subr.bf16.mxu0 0
  %795 = vmatpush1.bf16.msra.mxu0 %v628
  %796 = vmatprep.subr.bf16.mxu0 0
  %797 = vmatpush1.bf16.msra.mxu0 %v629
  %798 = vmatprep.subr.bf16.mxu0 0
  %799 = vmatpush1.bf16.msra.mxu0 %v630
  %800 = vmatprep.subr.bf16.mxu0 0
  %801 = vmatpush1.bf16.msra.mxu0 %v631
  %802 = vmatprep.subr.bf16.mxu0 0
  %803 = vmatpush1.bf16.msra.mxu0 %v632
  %804 = vmatprep.subr.bf16.mxu0 0
  %805 = vmatpush1.bf16.msra.mxu0 %v633
  %806 = vmatprep.subr.bf16.mxu0 0
  %807 = vmatpush1.bf16.msra.mxu0 %v634
  %808 = vmatprep.subr.bf16.mxu0 0
  %809 = vmatpush1.bf16.msra.mxu0 %v635
  %810 = vmatprep.subr.bf16.mxu0 0
  %811 = vmatpush1.bf16.msra.mxu0 %v636
  %812 = vmatprep.subr.bf16.mxu0 0
  %813 = vmatpush1.bf16.msra.mxu0 %v637
  %814 = vmatprep.subr.bf16.mxu0 0
  %815 = vmatpush1.bf16.msra.mxu0 %v638
  %816 = vmatprep.mubr.bf16.mxu0 %v370
  %817 = vmatmul.mubr.bf16.gmra.mrb[0].mxu0 %v369
  %v818 = vpop.f32.mrb[0].mxu0
  %v819 = vadd.f32 %v722, %v818
  %v820 = vpop.f32.mrb[0].mxu0
  %v821 = vpop.f32.mrb[0].mxu0
  %v822 = vadd.f32 %v725, %v821
  %v823 = vpop.f32.mrb[0].mxu0
  %824 = vmatprep.mubr.bf16.mxu0 %v375
  %825 = vmatmul.mubr.bf16.gmra.mrb[0].mxu0 %v374
  %v826 = vpop.f32.mrb[0].mxu0
  %v827 = vadd.f32 %v730, %v826
  %v828 = vpop.f32.mrb[0].mxu0
  %v829 = vpop.f32.mrb[0].mxu0
  %v830 = vadd.f32 %v733, %v829
  %v831 = vpop.f32.mrb[0].mxu0
  %832 = vmatprep.mubr.bf16.mxu0 %v380
  %833 = vmatmul.mubr.bf16.gmra.mrb[0].mxu0 %v379
  %v834 = vpop.f32.mrb[0].mxu0
  %v835 = vadd.f32 %v738, %v834
  %v836 = vpop.f32.mrb[0].mxu0
  %v837 = vpop.f32.mrb[0].mxu0
  %v838 = vadd.f32 %v741, %v837
  %v839 = vpop.f32.mrb[0].mxu0
  %840 = vmatprep.mubr.bf16.mxu0 %v385
  %841 = vmatmul.mubr.bf16.gmra.mrb[0].mxu0 %v384
  %v842 = vpop.f32.mrb[0].mxu0
  %v843 = vadd.f32 %v746, %v842
  %v844 = vpop.f32.mrb[0].mxu0
  %v845 = vpop.f32.mrb[0].mxu0
  %v846 = vadd.f32 %v749, %v845
  %v847 = vpop.f32.mrb[0].mxu0
  %848 = vmatprep.mubr.bf16.mxu0 %v390
  %849 = vmatmul.mubr.bf16.gmra.mrb[0].mxu0 %v389
  %v850 = vpop.f32.mrb[0].mxu0
  %v851 = vadd.f32 %v754, %v850
  %v852 = vpop.f32.mrb[0].mxu0
  %v853 = vpop.f32.mrb[0].mxu0
  %v854 = vadd.f32 %v757, %v853
  %v855 = vpop.f32.mrb[0].mxu0
  %856 = vmatprep.mubr.bf16.mxu0 %v395
  %857 = vmatmul.mubr.bf16.gmra.mrb[0].mxu0 %v394
  %v858 = vpop.f32.mrb[0].mxu0
  %v859 = vadd.f32 %v762, %v858
  %v860 = vpop.f32.mrb[0].mxu0
  %v861 = vpop.f32.mrb[0].mxu0
  %v862 = vadd.f32 %v765, %v861
  %v863 = vpop.f32.mrb[0].mxu0
  %864 = vmatprep.mubr.bf16.mxu0 %v400
  %865 = vmatmul.mubr.bf16.gmra.mrb[0].mxu0 %v399
  %v866 = vpop.f32.mrb[0].mxu0
  %v867 = vadd.f32 %v770, %v866
  %v868 = vpop.f32.mrb[0].mxu0
  %v869 = vpop.f32.mrb[0].mxu0
  %v870 = vadd.f32 %v773, %v869
  %v871 = vpop.f32.mrb[0].mxu0
  %872 = vmatprep.mubr.bf16.mxu0 %v405
  %873 = vmatmul.mubr.bf16.gmra.mrb[0].mxu0 %v404
  %v874 = vpop.f32.mrb[0].mxu0
  %v875 = vadd.f32 %v778, %v874
  %v876 = vpop.f32.mrb[0].mxu0
  %v877 = vpop.f32.mrb[0].mxu0
  %v878 = vadd.f32 %v781, %v877
  %v879 = vpop.f32.mrb[0].mxu0
  %880 = vdwg.mxu0
  %881 = vmatprep.subr.bf16.mxu0 0
  %882 = vmatpush1.bf16.msra.mxu0 %v639
  %883 = vmatprep.subr.bf16.mxu0 0
  %884 = vmatpush1.bf16.msra.mxu0 %v640
  %885 = vmatprep.subr.bf16.mxu0 0
  %886 = vmatpush1.bf16.msra.mxu0 %v641
  %887 = vmatprep.subr.bf16.mxu0 0
  %888 = vmatpush1.bf16.msra.mxu0 %v642
  %889 = vmatprep.subr.bf16.mxu0 0
  %890 = vmatpush1.bf16.msra.mxu0 %v643
  %891 = vmatprep.subr.bf16.mxu0 0
  %892 = vmatpush1.bf16.msra.mxu0 %v644
  %893 = vmatprep.subr.bf16.mxu0 0
  %894 = vmatpush1.bf16.msra.mxu0 %v645
  %895 = vmatprep.subr.bf16.mxu0 0
  %896 = vmatpush1.bf16.msra.mxu0 %v646
  %897 = vmatprep.subr.bf16.mxu0 0
  %898 = vmatpush1.bf16.msra.mxu0 0
  %899 = vmatprep.subr.bf16.mxu0 0
  %900 = vmatpush1.bf16.msra.mxu0 0
  %901 = vmatprep.subr.bf16.mxu0 0
  %902 = vmatpush1.bf16.msra.mxu0 0
  %903 = vmatprep.subr.bf16.mxu0 0
  %904 = vmatpush1.bf16.msra.mxu0 0
  %905 = vmatprep.subr.bf16.mxu0 0
  %906 = vmatpush1.bf16.msra.mxu0 0
  %907 = vmatprep.subr.bf16.mxu0 0
  %908 = vmatpush1.bf16.msra.mxu0 0
  %909 = vmatprep.subr.bf16.mxu0 0
  %910 = vmatpush1.bf16.msra.mxu0 0
  %911 = vmatprep.subr.bf16.mxu0 0
  %912 = vmatpush1.bf16.msra.mxu0 0
  %913 = vmatprep.mubr.bf16.mxu0 0
  %914 = vmatmul.mubr.bf16.gmra.mrb[0].mxu0 %v371
  %v915 = vpop.f32.mrb[0].mxu0
  %v916 = vadd.f32 %v819, %v915
  %v917 = vpop.f32.mrb[0].mxu0
  %v918 = vpop.f32.mrb[0].mxu0
  %v919 = vadd.f32 %v822, %v918
  %v920 = vpop.f32.mrb[0].mxu0
  %921 = vmatprep.mubr.bf16.mxu0 0
  %922 = vmatmul.mubr.bf16.gmra.mrb[0].mxu0 %v376
  %v923 = vpop.f32.mrb[0].mxu0
  %v924 = vadd.f32 %v827, %v923
  %v925 = vpop.f32.mrb[0].mxu0
  %v926 = vpop.f32.mrb[0].mxu0
  %v927 = vadd.f32 %v830, %v926
  %v928 = vpop.f32.mrb[0].mxu0
  %929 = vmatprep.mubr.bf16.mxu0 0
  %930 = vmatmul.mubr.bf16.gmra.mrb[0].mxu0 %v381
  %v931 = vpop.f32.mrb[0].mxu0
  %v932 = vadd.f32 %v835, %v931
  %v933 = vpop.f32.mrb[0].mxu0
  %v934 = vpop.f32.mrb[0].mxu0
  %v935 = vadd.f32 %v838, %v934
  %v936 = vpop.f32.mrb[0].mxu0
  %937 = vmatprep.mubr.bf16.mxu0 0
  %938 = vmatmul.mubr.bf16.gmra.mrb[0].mxu0 %v386
  %v939 = vpop.f32.mrb[0].mxu0
  %v940 = vadd.f32 %v843, %v939
  %v941 = vpop.f32.mrb[0].mxu0
  %v942 = vpop.f32.mrb[0].mxu0
  %v943 = vadd.f32 %v846, %v942
  %v944 = vpop.f32.mrb[0].mxu0
  %945 = vmatprep.mubr.bf16.mxu0 0
  %946 = vmatmul.mubr.bf16.gmra.mrb[0].mxu0 %v391
  %v947 = vpop.f32.mrb[0].mxu0
  %v948 = vadd.f32 %v851, %v947
  %v949 = vpop.f32.mrb[0].mxu0
  %v950 = vpop.f32.mrb[0].mxu0
  %v951 = vadd.f32 %v854, %v950
  %v952 = vpop.f32.mrb[0].mxu0
  %953 = vmatprep.mubr.bf16.mxu0 0
  %954 = vmatmul.mubr.bf16.gmra.mrb[0].mxu0 %v396
  %v955 = vpop.f32.mrb[0].mxu0
  %v956 = vadd.f32 %v859, %v955
  %v957 = vpop.f32.mrb[0].mxu0
  %v958 = vpop.f32.mrb[0].mxu0
  %v959 = vadd.f32 %v862, %v958
  %v960 = vpop.f32.mrb[0].mxu0
  %961 = vmatprep.mubr.bf16.mxu0 0
  %962 = vmatmul.mubr.bf16.gmra.mrb[0].mxu0 %v401
  %v963 = vpop.f32.mrb[0].mxu0
  %v964 = vadd.f32 %v867, %v963
  %v965 = vpop.f32.mrb[0].mxu0
  %v966 = vpop.f32.mrb[0].mxu0
  %v967 = vadd.f32 %v870, %v966
  %v968 = vpop.f32.mrb[0].mxu0
  %969 = vmatprep.mubr.bf16.mxu0 0
  %970 = vmatmul.mubr.bf16.gmra.mrb[0].mxu0 %v406
  %v971 = vpop.f32.mrb[0].mxu0
  %v972 = vadd.f32 %v875, %v971
  %v973 = vpop.f32.mrb[0].mxu0
  %v974 = vpop.f32.mrb[0].mxu0
  %v975 = vadd.f32 %v878, %v974
  %v976 = vpop.f32.mrb[0].mxu0
  %977 = vdwg.mxu0
  %vm978 = vcmp.ge.f32.partialorder %v916, 0.0
  %vm979 = vcmp.ge.f32.partialorder %v919, 0.0
  %vm980 = vcmp.ge.f32.partialorder %v924, 0.0
  %vm981 = vcmp.ge.f32.partialorder %v927, 0.0
  %vm982 = vcmp.ge.f32.partialorder %v932, 0.0
  %vm983 = vcmp.ge.f32.partialorder %v935, 0.0
  %vm984 = vcmp.ge.f32.partialorder %v940, 0.0
  %vm985 = vcmp.ge.f32.partialorder %v943, 0.0
  %vm986 = vcmp.ge.f32.partialorder %v948, 0.0
  %vm987 = vcmp.ge.f32.partialorder %v951, 0.0
  %vm988 = vcmp.ge.f32.partialorder %v956, 0.0
  %vm989 = vcmp.ge.f32.partialorder %v959, 0.0
  %vm990 = vcmp.ge.f32.partialorder %v964, 0.0
  %vm991 = vcmp.ge.f32.partialorder %v967, 0.0
  %vm992 = vcmp.ge.f32.partialorder %v972, 0.0
  %vm993 = vcmp.ge.f32.partialorder %v975, 0.0
  %v994 = vmul.f32 %v916, 0.1
  %v995 = vmul.f32 %v919, 0.1
  %v996 = vmul.f32 %v924, 0.1
  %v997 = vmul.f32 %v927, 0.1
  %v998 = vmul.f32 %v932, 0.1
  %v999 = vmul.f32 %v935, 0.1
  %v1000 = vmul.f32 %v940, 0.1
  %v1001 = vmul.f32 %v943, 0.1
  %v1002 = vmul.f32 %v948, 0.1
  %v1003 = vmul.f32 %v951, 0.1
  %v1004 = vmul.f32 %v956, 0.1
  %v1005 = vmul.f32 %v959, 0.1
  %v1006 = vmul.f32 %v964, 0.1
  %v1007 = vmul.f32 %v967, 0.1
  %v1008 = vmul.f32 %v972, 0.1
  %v1009 = vmul.f32 %v975, 0.1
  %v1010 = vsel %vm978, %v916, %v994
  %v1011 = vsel %vm979, %v919, %v995
  %v1012 = vsel %vm980, %v924, %v996
  %v1013 = vsel %vm981, %v927, %v997
  %v1014 = vsel %vm982, %v932, %v998
  %v1015 = vsel %vm983, %v935, %v999
  %v1016 = vsel %vm984, %v940, %v1000
  %v1017 = vsel %vm985, %v943, %v1001
  %v1018 = vsel %vm986, %v948, %v1002
  %v1019 = vsel %vm987, %v951, %v1003
  %v1020 = vsel %vm988, %v956, %v1004
  %v1021 = vsel %vm989, %v959, %v1005
  %v1022 = vsel %vm990, %v964, %v1006
  %v1023 = vsel %vm991, %v967, %v1007
  %v1024 = vsel %vm992, %v972, %v1008
  %v1025 = vsel %vm993, %v975, %v1009
  %v1026 = vpack.c.bf16 %v1011, %v1010
  %v1027 = vpack.c.bf16 %v1013, %v1012
  %v1028 = vpack.c.bf16 %v1015, %v1014
  %v1029 = vpack.c.bf16 %v1017, %v1016
  %v1030 = vpack.c.bf16 %v1019, %v1018
  %v1031 = vpack.c.bf16 %v1021, %v1020
  %v1032 = vpack.c.bf16 %v1023, %v1022
  %v1033 = vpack.c.bf16 %v1025, %v1024
  %v1042 = vunpack.c.l.b16 %v1026
  %v1043 = vunpack.c.h.b16 %v1026
  %v1044 = vunpack.c.l.b16 %v1027
  %v1045 = vunpack.c.h.b16 %v1027
  %v1046 = vunpack.c.l.b16 %v1028
  %v1047 = vunpack.c.h.b16 %v1028
  %v1048 = vunpack.c.l.b16 %v1029
  %v1049 = vunpack.c.h.b16 %v1029
  %v1050 = vunpack.c.l.b16 %v1030
  %v1051 = vunpack.c.h.b16 %v1030
  %v1052 = vunpack.c.l.b16 %v1031
  %v1053 = vunpack.c.h.b16 %v1031
  %v1054 = vunpack.c.l.b16 %v1032
  %v1055 = vunpack.c.h.b16 %v1032
  %v1056 = vunpack.c.l.b16 %v1033
  %v1057 = vunpack.c.h.b16 %v1033
  %v1058 = vpack.c.b16 %v1042, %v1042
  %v1059 = vpack.c.b16 %v1043, %v1043
  %v1060 = vpack.c.b16 %v1044, %v1044
  %v1061 = vpack.c.b16 %v1045, %v1045
  %v1062 = vpack.c.b16 %v1046, %v1046
  %v1063 = vpack.c.b16 %v1047, %v1047
  %v1064 = vpack.c.b16 %v1048, %v1048
  %v1065 = vpack.c.b16 %v1049, %v1049
  %v1066 = vpack.c.b16 %v1050, %v1050
  %v1067 = vpack.c.b16 %v1051, %v1051
  %v1068 = vpack.c.b16 %v1052, %v1052
  %v1069 = vpack.c.b16 %v1053, %v1053
  %v1070 = vpack.c.b16 %v1054, %v1054
  %v1071 = vpack.c.b16 %v1055, %v1055
  %v1072 = vpack.c.b16 %v1056, %v1056
  %v1073 = vpack.c.b16 %v1057, %v1057
  %1090 = vst [vmem:[%s3] sm:$0xf] %v1058
  %1091 = vst [vmem:[%s3 + $0x4] sm:$0xf] %v1059
  %1092 = vst [vmem:[%s3 + $0x8] sm:$0xf] %v1060
  %1093 = vst [vmem:[%s3 + $0xc] sm:$0xf] %v1061
  %1094 = vst [vmem:[%s3 + $0x10] sm:$0xf] %v1062
  %1095 = vst [vmem:[%s3 + $0x14] sm:$0xf] %v1063
  %1096 = vst [vmem:[%s3 + $0x18] sm:$0xf] %v1064
  %1097 = vst [vmem:[%s3 + $0x1c] sm:$0xf] %v1065
  %1098 = vst [vmem:[%s3 + $0x20] sm:$0xf] %v1066
  %1099 = vst [vmem:[%s3 + $0x24] sm:$0xf] %v1067
  %1100 = vst [vmem:[%s3 + $0x28] sm:$0xf] %v1068
  %1101 = vst [vmem:[%s3 + $0x2c] sm:$0xf] %v1069
  %1102 = vst [vmem:[%s3 + $0x30] sm:$0xf] %v1070
  %1103 = vst [vmem:[%s3 + $0x34] sm:$0xf] %v1071
  %1104 = vst [vmem:[%s3 + $0x38] sm:$0xf] %v1072
  %1105 = vst [vmem:[%s3 + $0x3c] sm:$0xf] %v1073
  // Predicated region
  $region14: #{fwd.28} parent=0 // pred_check
    _
  $region15: #{fwd.28} parent=0 // pred_check_branch
    %1107 = sbr.rel (0) target = $region17
  $region16: #{fwd.28} parent=0 // pred_region
    _
  $region17: #{fwd.28} parent=0 // pred_fallthru
    _
  // Predicated region
  $region18: #{fwd.28} parent=0 // pred_check
    _
  $region19: #{fwd.28} parent=0 // pred_check_branch
    %1109 = sbr.rel (0) target = $region21
  $region20: #{fwd.28} parent=0 // pred_region
    _
  $region21: #{fwd.28} parent=0 // pred_fallthru
    _

// kernel: fwd.29
$region0: #{fwd.29}
  #allocation0 [shape = 'u32[]', space=smem, size = 0x4, offset = 0x4, fixed_abs, tag = 'smem constant byte address 0x4 - core index']
  #allocation1 [shape = 'u32[144,128]{1,0:T(1,128)}', space=vmem, size = 0x12000, scoped, tag = 'internal scratch']
  %s0 = inlined_call_operand.vmem [shape: bf16[16,384], index: 0, kind: input, shape index: {}]
  %s1 = inlined_call_operand.vmem [shape: bf16[384,128], index: 1, kind: input, shape index: {}]
  %s2 = inlined_call_operand.vmem [shape: f32[16,1], index: 2, kind: input, shape index: {}]
  %s3 = inlined_call_operand.vmem [shape: f32[16,128], index: 3, kind: output, shape index: {}]
  %s4 = sld [smem:[#allocation0]]
  $region22: #{fwd.29} parent=0
    _
  %s6 = ssub.s32 1, %s4
  %s7 = scalar_select 0, %s6, %s4
  // Predicated region
  $region2: #{fwd.29} parent=0 // pred_check
    _
  $region3: #{fwd.29} parent=0 // pred_check_branch
    %9 = sbr.rel (0) target = $region5
  $region4: #{fwd.29} parent=0 // pred_region
    _
  $region5: #{fwd.29} parent=0 // pred_fallthru
    _
  // Predicated region
  $region6: #{fwd.29} parent=0 // pred_check
    _
  $region7: #{fwd.29} parent=0 // pred_check_branch
    %11 = sbr.rel (0) target = $region9
  $region8: #{fwd.29} parent=0 // pred_region
    _
  $region9: #{fwd.29} parent=0 // pred_fallthru
    _
  // Predicated region
  $region10: #{fwd.29} parent=0 // pred_check
    _
  $region11: #{fwd.29} parent=0 // pred_check_branch
    %13 = sbr.rel (0) target = $region13
  $region12: #{fwd.29} parent=0 // pred_region
    _
  $region13: #{fwd.29} parent=0 // pred_fallthru
    _
  %v15 = vld [vmem:[%s0] sm:$0xff]
  %v16 = vld [vmem:[%s0 + $0x8] sm:$0xf]
  %v17 = vld [vmem:[%s0 + $0xc] sm:$0xff]
  %v18 = vld [vmem:[%s0 + $0x14] sm:$0xf]
  %v19 = vld [vmem:[%s1] sm:$0xf]
  %v20 = vld [vmem:[%s1 + $0x4] sm:$0xf]
  %v21 = vld [vmem:[%s1 + $0x8] sm:$0xf]
  %v22 = vld [vmem:[%s1 + $0xc] sm:$0xf]
  %v23 = vld [vmem:[%s1 + $0x10] sm:$0xf]
  %v24 = vld [vmem:[%s1 + $0x14] sm:$0xf]
  %v25 = vld [vmem:[%s1 + $0x18] sm:$0xf]
  %v26 = vld [vmem:[%s1 + $0x1c] sm:$0xf]
  %v27 = vld [vmem:[%s1 + $0x20] sm:$0xf]
  %v28 = vld [vmem:[%s1 + $0x24] sm:$0xf]
  %v29 = vld [vmem:[%s1 + $0x28] sm:$0xf]
  %v30 = vld [vmem:[%s1 + $0x2c] sm:$0xf]
  %v31 = vld [vmem:[%s1 + $0x30] sm:$0xf]
  %v32 = vld [vmem:[%s1 + $0x34] sm:$0xf]
  %v33 = vld [vmem:[%s1 + $0x38] sm:$0xf]
  %v34 = vld [vmem:[%s1 + $0x3c] sm:$0xf]
  %v35 = vld [vmem:[%s1 + $0x40] sm:$0xf]
  %v36 = vld [vmem:[%s1 + $0x44] sm:$0xf]
  %v37 = vld [vmem:[%s1 + $0x48] sm:$0xf]
  %v38 = vld [vmem:[%s1 + $0x4c] sm:$0xf]
  %v39 = vld [vmem:[%s1 + $0x50] sm:$0xf]
  %v40 = vld [vmem:[%s1 + $0x54] sm:$0xf]
  %v41 = vld [vmem:[%s1 + $0x58] sm:$0xf]
  %v42 = vld [vmem:[%s1 + $0x5c] sm:$0xf]
  %v43 = vld [vmem:[%s1 + $0x60] sm:$0xf]
  %v44 = vld [vmem:[%s1 + $0x64] sm:$0xf]
  %v45 = vld [vmem:[%s1 + $0x68] sm:$0xf]
  %v46 = vld [vmem:[%s1 + $0x6c] sm:$0xf]
  %v47 = vld [vmem:[%s1 + $0x70] sm:$0xf]
  %v48 = vld [vmem:[%s1 + $0x74] sm:$0xf]
  %v49 = vld [vmem:[%s1 + $0x78] sm:$0xf]
  %v50 = vld [vmem:[%s1 + $0x7c] sm:$0xf]
  %v51 = vld [vmem:[%s1 + $0x80] sm:$0xf]
  %v52 = vld [vmem:[%s1 + $0x84] sm:$0xf]
  %v53 = vld [vmem:[%s1 + $0x88] sm:$0xf]
  %v54 = vld [vmem:[%s1 + $0x8c] sm:$0xf]
  %v55 = vld [vmem:[%s1 + $0x90] sm:$0xf]
  %v56 = vld [vmem:[%s1 + $0x94] sm:$0xf]
  %v57 = vld [vmem:[%s1 + $0x98] sm:$0xf]
  %v58 = vld [vmem:[%s1 + $0x9c] sm:$0xf]
  %v59 = vld [vmem:[%s1 + $0xa0] sm:$0xf]
  %v60 = vld [vmem:[%s1 + $0xa4] sm:$0xf]
  %v61 = vld [vmem:[%s1 + $0xa8] sm:$0xf]
  %v62 = vld [vmem:[%s1 + $0xac] sm:$0xf]
  %v63 = vld [vmem:[%s1 + $0xb0] sm:$0xf]
  %v64 = vld [vmem:[%s1 + $0xb4] sm:$0xf]
  %v65 = vld [vmem:[%s1 + $0xb8] sm:$0xf]
  %v66 = vld [vmem:[%s1 + $0xbc] sm:$0xf]
  %v67 = vld [vmem:[%s2] sm:$0xff]
  %v68 = vld [vmem:[%s2 + $0x8] sm:$0xff]
  %70 = vset.pattern.permute.xlu0 0
  %71 = vperm.xlu0 %70, %v67
  %v72 = vpop.permute.xlu0 %71
  %75 = vset.pattern.permute.xlu0 0
  %76 = vperm.xlu0 %75, %v68
  %v77 = vpop.permute.xlu0 %76
  %v83 = vunpack.c.l.b16 %v15
  %v84 = vunpack.c.h.b16 %v15
  %v85 = vunpack.c.l.b16 %v16
  %v86 = vunpack.c.l.b16 %v17
  %v87 = vunpack.c.h.b16 %v17
  %v88 = vunpack.c.l.b16 %v18
  %v89 = vpack.c.b16 %v86, %v83
  %v90 = vpack.c.b16 %v87, %v84
  %v91 = vpack.c.b16 %v88, %v85
  %v143 = vunpack.c.l.b16 %v19
  %v144 = vunpack.c.l.b16 %v20
  %v145 = vunpack.c.l.b16 %v21
  %v146 = vunpack.c.l.b16 %v22
  %v147 = vunpack.c.l.b16 %v23
  %v148 = vunpack.c.l.b16 %v24
  %v149 = vunpack.c.l.b16 %v25
  %v150 = vunpack.c.l.b16 %v26
  %v151 = vunpack.c.l.b16 %v27
  %v152 = vunpack.c.l.b16 %v28
  %v153 = vunpack.c.l.b16 %v29
  %v154 = vunpack.c.l.b16 %v30
  %v155 = vunpack.c.l.b16 %v31
  %v156 = vunpack.c.l.b16 %v32
  %v157 = vunpack.c.l.b16 %v33
  %v158 = vunpack.c.l.b16 %v34
  %v159 = vunpack.c.l.b16 %v35
  %v160 = vunpack.c.l.b16 %v36
  %v161 = vunpack.c.l.b16 %v37
  %v162 = vunpack.c.l.b16 %v38
  %v163 = vunpack.c.l.b16 %v39
  %v164 = vunpack.c.l.b16 %v40
  %v165 = vunpack.c.l.b16 %v41
  %v166 = vunpack.c.l.b16 %v42
  %v167 = vunpack.c.l.b16 %v43
  %v168 = vunpack.c.l.b16 %v44
  %v169 = vunpack.c.l.b16 %v45
  %v170 = vunpack.c.l.b16 %v46
  %v171 = vunpack.c.l.b16 %v47
  %v172 = vunpack.c.l.b16 %v48
  %v173 = vunpack.c.l.b16 %v49
  %v174 = vunpack.c.l.b16 %v50
  %v175 = vunpack.c.l.b16 %v51
  %v176 = vunpack.c.l.b16 %v52
  %v177 = vunpack.c.l.b16 %v53
  %v178 = vunpack.c.l.b16 %v54
  %v179 = vunpack.c.l.b16 %v55
  %v180 = vunpack.c.l.b16 %v56
  %v181 = vunpack.c.l.b16 %v57
  %v182 = vunpack.c.l.b16 %v58
  %v183 = vunpack.c.l.b16 %v59
  %v184 = vunpack.c.l.b16 %v60
  %v185 = vunpack.c.l.b16 %v61
  %v186 = vunpack.c.l.b16 %v62
  %v187 = vunpack.c.l.b16 %v63
  %v188 = vunpack.c.l.b16 %v64
  %v189 = vunpack.c.l.b16 %v65
  %v190 = vunpack.c.l.b16 %v66
  %v191 = vpack.c.b16 %v144, %v143
  %v192 = vpack.c.b16 %v146, %v145
  %v193 = vpack.c.b16 %v148, %v147
  %v194 = vpack.c.b16 %v150, %v149
  %v195 = vpack.c.b16 %v152, %v151
  %v196 = vpack.c.b16 %v154, %v153
  %v197 = vpack.c.b16 %v156, %v155
  %v198 = vpack.c.b16 %v158, %v157
  %v199 = vpack.c.b16 %v160, %v159
  %v200 = vpack.c.b16 %v162, %v161
  %v201 = vpack.c.b16 %v164, %v163
  %v202 = vpack.c.b16 %v166, %v165
  %v203 = vpack.c.b16 %v168, %v167
  %v204 = vpack.c.b16 %v170, %v169
  %v205 = vpack.c.b16 %v172, %v171
  %v206 = vpack.c.b16 %v174, %v173
  %v207 = vpack.c.b16 %v176, %v175
  %v208 = vpack.c.b16 %v178, %v177
  %v209 = vpack.c.b16 %v180, %v179
  %v210 = vpack.c.b16 %v182, %v181
  %v211 = vpack.c.b16 %v184, %v183
  %v212 = vpack.c.b16 %v186, %v185
  %v213 = vpack.c.b16 %v188, %v187
  %v214 = vpack.c.b16 %v190, %v189
  %239 = vmatprep.subr.bf16.mxu0 0
  %240 = vmatpush1.bf16.msra.mxu0 %v191
  %241 = vmatprep.subr.bf16.mxu0 0
  %242 = vmatpush1.bf16.msra.mxu0 %v192
  %243 = vmatprep.subr.bf16.mxu0 0
  %244 = vmatpush1.bf16.msra.mxu0 %v193
  %245 = vmatprep.subr.bf16.mxu0 0
  %246 = vmatpush1.bf16.msra.mxu0 %v194
  %247 = vmatprep.subr.bf16.mxu0 0
  %248 = vmatpush1.bf16.msra.mxu0 %v195
  %249 = vmatprep.subr.bf16.mxu0 0
  %250 = vmatpush1.bf16.msra.mxu0 %v196
  %251 = vmatprep.subr.bf16.mxu0 0
  %252 = vmatpush1.bf16.msra.mxu0 %v197
  %253 = vmatprep.subr.bf16.mxu0 0
  %254 = vmatpush1.bf16.msra.mxu0 %v198
  %255 = vmatprep.subr.bf16.mxu0 0
  %256 = vmatpush1.bf16.msra.mxu0 %v199
  %257 = vmatprep.subr.bf16.mxu0 0
  %258 = vmatpush1.bf16.msra.mxu0 %v200
  %259 = vmatprep.subr.bf16.mxu0 0
  %260 = vmatpush1.bf16.msra.mxu0 %v201
  %261 = vmatprep.subr.bf16.mxu0 0
  %262 = vmatpush1.bf16.msra.mxu0 %v202
  %263 = vmatprep.subr.bf16.mxu0 0
  %264 = vmatpush1.bf16.msra.mxu0 %v203
  %265 = vmatprep.subr.bf16.mxu0 0
  %266 = vmatpush1.bf16.msra.mxu0 %v204
  %267 = vmatprep.subr.bf16.mxu0 0
  %268 = vmatpush1.bf16.msra.mxu0 %v205
  %269 = vmatprep.subr.bf16.mxu0 0
  %270 = vmatpush1.bf16.msra.mxu0 %v206
  %271 = vmatprep.mubr.bf16.mxu0 %v90
  %272 = vmatmul.mubr.bf16.gmra.mrb[0].mxu0 %v89
  %v273 = vpop.f32.mrb[0].mxu0
  %v274 = vadd.f32 %v72, %v273
  %v275 = vpop.f32.mrb[0].mxu0
  %v276 = vpop.f32.mrb[0].mxu0
  %v277 = vadd.f32 %v77, %v276
  %v278 = vpop.f32.mrb[0].mxu0
  %279 = vdwg.mxu0
  %280 = vmatprep.subr.bf16.mxu0 0
  %281 = vmatpush1.bf16.msra.mxu0 %v207
  %282 = vmatprep.subr.bf16.mxu0 0
  %283 = vmatpush1.bf16.msra.mxu0 %v208
  %284 = vmatprep.subr.bf16.mxu0 0
  %285 = vmatpush1.bf16.msra.mxu0 %v209
  %286 = vmatprep.subr.bf16.mxu0 0
  %287 = vmatpush1.bf16.msra.mxu0 %v210
  %288 = vmatprep.subr.bf16.mxu0 0
  %289 = vmatpush1.bf16.msra.mxu0 %v211
  %290 = vmatprep.subr.bf16.mxu0 0
  %291 = vmatpush1.bf16.msra.mxu0 %v212
  %292 = vmatprep.subr.bf16.mxu0 0
  %293 = vmatpush1.bf16.msra.mxu0 %v213
  %294 = vmatprep.subr.bf16.mxu0 0
  %295 = vmatpush1.bf16.msra.mxu0 %v214
  %296 = vmatprep.subr.bf16.mxu0 0
  %297 = vmatpush1.bf16.msra.mxu0 0
  %298 = vmatprep.subr.bf16.mxu0 0
  %299 = vmatpush1.bf16.msra.mxu0 0
  %300 = vmatprep.subr.bf16.mxu0 0
  %301 = vmatpush1.bf16.msra.mxu0 0
  %302 = vmatprep.subr.bf16.mxu0 0
  %303 = vmatpush1.bf16.msra.mxu0 0
  %304 = vmatprep.subr.bf16.mxu0 0
  %305 = vmatpush1.bf16.msra.mxu0 0
  %306 = vmatprep.subr.bf16.mxu0 0
  %307 = vmatpush1.bf16.msra.mxu0 0
  %308 = vmatprep.subr.bf16.mxu0 0
  %309 = vmatpush1.bf16.msra.mxu0 0
  %310 = vmatprep.subr.bf16.mxu0 0
  %311 = vmatpush1.bf16.msra.mxu0 0
  %312 = vmatprep.mubr.bf16.mxu0 0
  %313 = vmatmul.mubr.bf16.gmra.mrb[0].mxu0 %v91
  %v314 = vpop.f32.mrb[0].mxu0
  %v315 = vadd.f32 %v274, %v314
  %v316 = vpop.f32.mrb[0].mxu0
  %v317 = vpop.f32.mrb[0].mxu0
  %v318 = vadd.f32 %v277, %v317
  %v319 = vpop.f32.mrb[0].mxu0
  %320 = vdwg.mxu0
  %321 = vst [vmem:[%s3] sm:$0xff] %v315
  %322 = vst [vmem:[%s3 + $0x8] sm:$0xff] %v318
  // Predicated region
  $region14: #{fwd.29} parent=0 // pred_check
    _
  $region15: #{fwd.29} parent=0 // pred_check_branch
    %324 = sbr.rel (0) target = $region17
  $region16: #{fwd.29} parent=0 // pred_region
    _
  $region17: #{fwd.29} parent=0 // pred_fallthru
    _
  // Predicated region
  $region18: #{fwd.29} parent=0 // pred_check
    _
  $region19: #{fwd.29} parent=0 // pred_check_branch
    %326 = sbr.rel (0) target = $region21
  $region20: #{fwd.29} parent=0 // pred_region
    _
  $region21: #{fwd.29} parent=0 // pred_fallthru
    _

</llo_original>
